<compile_context>
chip_gen: v6e
topology: v6e:2x2x1
jax: 0.10.0
libtpu: 0.0.40
codegen_flags: <defaults>
</compile_context>

<pallas_src>
import jax
import jax.numpy as jnp
from jax.experimental import pallas as pl
from jax.experimental.pallas import tpu as pltpu


def _make_multi_conv_kernel(H, W, layer_dims):
    """Builds the fused kernel for a static list of (Ci, Co) per layer."""
    n_layers = len(layer_dims)

    def kernel(*refs):
        # refs = (x_pad, w_0..w_{L-1}, b_0..b_{L-1}, out)
        x_ref = refs[0]
        w_refs = refs[1:1 + n_layers]
        b_refs = refs[1 + n_layers:1 + 2 * n_layers]
        o_ref = refs[1 + 2 * n_layers]

        # Zero-padded bf16 activation for the current layer, (H+2, W+2, Ci).
        xp = x_ref[0]

        for l, (ci, co) in enumerate(layer_dims):
            # im2col: concatenate the 9 shifted taps along channels -> one
            # K = 9*Ci matmul on the MXU (tap order (dy, dx, ci) matches the
            # host-side weight reshape).
            cols = []
            for dy in range(3):
                for dx in range(3):
                    cols.append(xp[dy:dy + H, dx:dx + W, :])
            patch = jnp.concatenate(cols, axis=-1).reshape(H * W, 9 * ci)

            acc = jnp.dot(patch, w_refs[l][...],
                          preferred_element_type=jnp.float32)
            acc = acc + b_refs[l][...]                    # (1, Co) broadcast, f32
            act = jnp.maximum(acc, 0.0)                   # (H*W, Co) f32

            if l == n_layers - 1:
                o_ref[0] = act.reshape(H, W, co).astype(o_ref.dtype)
            else:
                # Keep the intermediate in bf16 and rebuild the zero halo
                # in-kernel (no HBM round trip between layers).
                a3 = act.reshape(H, W, co).astype(jnp.bfloat16)
                zr = jnp.zeros((1, W, co), jnp.bfloat16)
                a3 = jnp.concatenate([zr, a3, zr], axis=0)          # (H+2, W, Co)
                zc = jnp.zeros((H + 2, 1, co), jnp.bfloat16)
                xp = jnp.concatenate([zc, a3, zc], axis=1)          # (H+2, W+2, Co)

    return kernel


def multi_conv_pallas(x_nhwc, params):
    """x_nhwc: (N, H, W, Cin) f32; params: list of (w (3,3,Ci,Co) f32, b (Co,) f32)."""
    N, H, W, ci0 = x_nhwc.shape
    layer_dims = [(int(w.shape[2]), int(w.shape[3])) for w, _ in params]
    co_last = layer_dims[-1][1]

    # bf16 operands for the MXU; zero halo applied once on the host for the input.
    xp = jnp.pad(x_nhwc.astype(jnp.bfloat16), ((0, 0), (1, 1), (1, 1), (0, 0)))
    # Host-side weight repack: (3, 3, Ci, Co) -> (9*Ci, Co) bf16, tap order (dy, dx, ci).
    w_flat = [w.astype(jnp.bfloat16).reshape(9 * cc[0], cc[1])
              for (w, _), cc in zip(params, layer_dims)]
    b_flat = [b.reshape(1, -1).astype(jnp.float32) for _, b in params]

    in_specs = [pl.BlockSpec((1, H + 2, W + 2, ci0), lambda n: (n, 0, 0, 0))]
    for ci, co in layer_dims:                       # weights: grid-invariant
        in_specs.append(pl.BlockSpec((9 * ci, co), lambda n: (0, 0)))
    for ci, co in layer_dims:                       # biases: grid-invariant
        in_specs.append(pl.BlockSpec((1, co), lambda n: (0, 0)))

    flops = 2 * N * H * W * sum(9 * ci * co for ci, co in layer_dims)
    bytes_accessed = (xp.size * 2 + N * H * W * co_last * 4
                      + sum(wf.size * 2 for wf in w_flat)
                      + sum(bf.size * 4 for bf in b_flat))

    kernel = _make_multi_conv_kernel(H, W, layer_dims)
    return pl.pallas_call(
        kernel,
        out_shape=jax.ShapeDtypeStruct((N, H, W, co_last), jnp.float32),
        grid=(N,),
        in_specs=in_specs,
        out_specs=pl.BlockSpec((1, H, W, co_last), lambda n: (n, 0, 0, 0)),
        compiler_params=pltpu.CompilerParams(
            dimension_semantics=("parallel",),
            # Explicit scoped-VMEM budget; 48 MiB is within every generation's
            # physical VMEM (incl. v7x's 64 MiB).
            vmem_limit_bytes=48 * 1024 * 1024),
        cost_estimate=pl.CostEstimate(flops=flops, transcendentals=0,
                                      bytes_accessed=bytes_accessed),
    )(xp, *w_flat, *b_flat)


def init_multi_conv_params(key, in_channels, out_channels, mid_channels=None,
                           num_convs=2):
    """PyTorch Conv2d-style init (uniform +-1/sqrt(fan_in)); w in (3,3,Ci,Co)."""
    if not mid_channels:
        mid_channels = out_channels
    channel_pairs = [(in_channels, mid_channels)]
    for _ in range(num_convs - 2):
        channel_pairs.append((mid_channels, mid_channels))
    channel_pairs.append((mid_channels, out_channels))

    params = []
    for ci, co in channel_pairs:
        key, kw, kb = jax.random.split(key, 3)
        fan_in = ci * 3 * 3
        bound = 1.0 / jnp.sqrt(fan_in)
        w = jax.random.uniform(kw, (3, 3, ci, co), jnp.float32, -bound, bound)
        b = jax.random.uniform(kb, (co,), jnp.float32, -bound, bound)
        params.append((w, b))
    return params


@jax.jit
def multi_conv_forward(x_nchw, params):
    """Equivalent of MultiConv.forward (batchnorm=False)."""
    x = jnp.transpose(x_nchw, (0, 2, 3, 1))        # NCHW -> NHWC (channels on lanes)
    out = multi_conv_pallas(x, params)
    return jnp.transpose(out, (0, 3, 1, 2))        # NHWC -> NCHW


def reference_forward(x_nchw, params):
    """Pure-JAX reference mirroring the kernel's bf16 operand rounding."""
    x = x_nchw.astype(jnp.bfloat16).astype(jnp.float32)
    for i, (w, b) in enumerate(params):
        wf = w.astype(jnp.bfloat16).astype(jnp.float32)
        w_oihw = jnp.transpose(wf, (3, 2, 0, 1))
        y = jax.lax.conv_general_dilated(
            x, w_oihw, window_strides=(1, 1), padding="SAME",
            dimension_numbers=("NCHW", "OIHW", "NCHW"),
            precision=jax.lax.Precision.HIGHEST)
        a = jnp.maximum(y + b[None, :, None, None], 0.0)
        if i < len(params) - 1:
            a = a.astype(jnp.bfloat16).astype(jnp.float32)   # bf16 layer handoff
        x = a
    return x


if __name__ == "__main__":
    key = jax.random.PRNGKey(0)
    k_x, k_p = jax.random.split(key)

    batch, in_channels, out_channels, H, W = 2, 4, 8, 16, 16
    x = jax.random.normal(k_x, (batch, in_channels, H, W), jnp.float32)

    params = init_multi_conv_params(k_p, in_channels, out_channels,
                                    mid_channels=None, num_convs=2)

    out = jax.block_until_ready(multi_conv_forward(x, params))
    ref = reference_forward(x, params)

    assert out.shape == (batch, out_channels, H, W), out.shape
    max_err = float(jnp.max(jnp.abs(out - ref)))
    assert jnp.allclose(out, ref, atol=5e-3, rtol=5e-3), max_err

    print("KERNEL_OK")
</pallas_src>

<mosaic_0001>
module attributes {stable_mosaic.version = 11 : i64} {
  func.func @kernel(%arg0: i32, %arg1: memref<1x18x18x4xbf16, #tpu.memory_space<vmem>>, %arg2: memref<36x8xbf16, #tpu.memory_space<vmem>>, %arg3: memref<72x8xbf16, #tpu.memory_space<vmem>>, %arg4: memref<1x8xf32, #tpu.memory_space<vmem>>, %arg5: memref<1x8xf32, #tpu.memory_space<vmem>>, %arg6: memref<1x16x16x8xf32, #tpu.memory_space<vmem>>) attributes {dimension_semantics = [#tpu.dimension_semantics<parallel>], iteration_bounds = array<i64: 2>, scalar_prefetch = 0 : i64, scratch_operands = 0 : i64, tpu.core_type = #tpu.core_type<tc>, window_params = [{transform_indices = @transform_0, window_bounds = array<i64: 1, 18, 18, 4>}, {pipeline_mode = #tpu.pipeline_mode<synchronous>, transform_indices = @transform_1, window_bounds = array<i64: 36, 8>}, {pipeline_mode = #tpu.pipeline_mode<synchronous>, transform_indices = @transform_2, window_bounds = array<i64: 72, 8>}, {pipeline_mode = #tpu.pipeline_mode<synchronous>, transform_indices = @transform_3, window_bounds = array<i64: 1, 8>}, {pipeline_mode = #tpu.pipeline_mode<synchronous>, transform_indices = @transform_4, window_bounds = array<i64: 1, 8>}, {transform_indices = @transform_5, window_bounds = array<i64: 1, 16, 16, 8>}]} {
    %c0 = arith.constant 0 : index
    %c0_0 = arith.constant 0 : index
    %c0_1 = arith.constant 0 : index
    %c0_2 = arith.constant 0 : index
    %0 = vector.load %arg1[%c0, %c0_0, %c0_1, %c0_2] : memref<1x18x18x4xbf16, #tpu.memory_space<vmem>>, vector<1x18x18x4xbf16>
    %1 = vector.shape_cast %0 : vector<1x18x18x4xbf16> to vector<18x18x4xbf16>
    %2 = vector.extract_strided_slice %1 {offsets = [0, 0, 0], sizes = [16, 16, 4], strides = [1, 1, 1]} : vector<18x18x4xbf16> to vector<16x16x4xbf16>
    %3 = vector.extract_strided_slice %1 {offsets = [0, 1, 0], sizes = [16, 16, 4], strides = [1, 1, 1]} : vector<18x18x4xbf16> to vector<16x16x4xbf16>
    %4 = vector.extract_strided_slice %1 {offsets = [0, 2, 0], sizes = [16, 16, 4], strides = [1, 1, 1]} : vector<18x18x4xbf16> to vector<16x16x4xbf16>
    %5 = vector.extract_strided_slice %1 {offsets = [1, 0, 0], sizes = [16, 16, 4], strides = [1, 1, 1]} : vector<18x18x4xbf16> to vector<16x16x4xbf16>
    %6 = vector.extract_strided_slice %1 {offsets = [1, 1, 0], sizes = [16, 16, 4], strides = [1, 1, 1]} : vector<18x18x4xbf16> to vector<16x16x4xbf16>
    %7 = vector.extract_strided_slice %1 {offsets = [1, 2, 0], sizes = [16, 16, 4], strides = [1, 1, 1]} : vector<18x18x4xbf16> to vector<16x16x4xbf16>
    %8 = vector.extract_strided_slice %1 {offsets = [2, 0, 0], sizes = [16, 16, 4], strides = [1, 1, 1]} : vector<18x18x4xbf16> to vector<16x16x4xbf16>
    %9 = vector.extract_strided_slice %1 {offsets = [2, 1, 0], sizes = [16, 16, 4], strides = [1, 1, 1]} : vector<18x18x4xbf16> to vector<16x16x4xbf16>
    %10 = vector.extract_strided_slice %1 {offsets = [2, 2, 0], sizes = [16, 16, 4], strides = [1, 1, 1]} : vector<18x18x4xbf16> to vector<16x16x4xbf16>
    %11 = tpu.concatenate %2, %3, %4, %5, %6, %7, %8, %9, %10 in 2 : vector<16x16x4xbf16>, vector<16x16x4xbf16>, vector<16x16x4xbf16>, vector<16x16x4xbf16>, vector<16x16x4xbf16>, vector<16x16x4xbf16>, vector<16x16x4xbf16>, vector<16x16x4xbf16>, vector<16x16x4xbf16> -> vector<16x16x36xbf16>
    %12 = vector.shape_cast %11 : vector<16x16x36xbf16> to vector<256x36xbf16>
    %c0_3 = arith.constant 0 : index
    %c0_4 = arith.constant 0 : index
    %13 = vector.load %arg2[%c0_3, %c0_4] : memref<36x8xbf16, #tpu.memory_space<vmem>>, vector<36x8xbf16>
    %cst = arith.constant dense<0.000000e+00> : vector<256x8xf32>
    %14 = tpu.matmul %12, %13, %cst {dimension_numbers = #tpu.dot_dimension_numbers<[1], [0], [0], [1], [0, 0, 1, 1], [], []>} : vector<256x36xbf16>, vector<36x8xbf16>, vector<256x8xf32> -> vector<256x8xf32>
    %c0_5 = arith.constant 0 : index
    %c0_6 = arith.constant 0 : index
    %15 = vector.load %arg4[%c0_5, %c0_6] : memref<1x8xf32, #tpu.memory_space<vmem>>, vector<1x8xf32>
    %16 = vector.broadcast %15 : vector<1x8xf32> to vector<256x8xf32>
    %17 = arith.addf %14, %16 : vector<256x8xf32>
    %cst_7 = arith.constant 0.000000e+00 : f32
    %18 = vector.broadcast %cst_7 : f32 to vector<256x8xf32>
    %19 = arith.maximumf %17, %18 : vector<256x8xf32>
    %20 = vector.shape_cast %19 : vector<256x8xf32> to vector<16x16x8xf32>
    %21 = arith.truncf %20 : vector<16x16x8xf32> to vector<16x16x8xbf16>
    %cst_8 = arith.constant 0.000000e+00 : bf16
    %22 = vector.broadcast %cst_8 : bf16 to vector<1x16x8xbf16>
    %23 = tpu.concatenate %22, %21, %22 in 0 : vector<1x16x8xbf16>, vector<16x16x8xbf16>, vector<1x16x8xbf16> -> vector<18x16x8xbf16>
    %cst_9 = arith.constant 0.000000e+00 : bf16
    %24 = vector.broadcast %cst_9 : bf16 to vector<18x1x8xbf16>
    %25 = tpu.concatenate %24, %23, %24 in 1 : vector<18x1x8xbf16>, vector<18x16x8xbf16>, vector<18x1x8xbf16> -> vector<18x18x8xbf16>
    %26 = vector.extract_strided_slice %25 {offsets = [0, 0, 0], sizes = [16, 16, 8], strides = [1, 1, 1]} : vector<18x18x8xbf16> to vector<16x16x8xbf16>
    %27 = vector.extract_strided_slice %25 {offsets = [0, 1, 0], sizes = [16, 16, 8], strides = [1, 1, 1]} : vector<18x18x8xbf16> to vector<16x16x8xbf16>
    %28 = vector.extract_strided_slice %25 {offsets = [0, 2, 0], sizes = [16, 16, 8], strides = [1, 1, 1]} : vector<18x18x8xbf16> to vector<16x16x8xbf16>
    %29 = vector.extract_strided_slice %25 {offsets = [1, 0, 0], sizes = [16, 16, 8], strides = [1, 1, 1]} : vector<18x18x8xbf16> to vector<16x16x8xbf16>
    %30 = vector.extract_strided_slice %25 {offsets = [1, 1, 0], sizes = [16, 16, 8], strides = [1, 1, 1]} : vector<18x18x8xbf16> to vector<16x16x8xbf16>
    %31 = vector.extract_strided_slice %25 {offsets = [1, 2, 0], sizes = [16, 16, 8], strides = [1, 1, 1]} : vector<18x18x8xbf16> to vector<16x16x8xbf16>
    %32 = vector.extract_strided_slice %25 {offsets = [2, 0, 0], sizes = [16, 16, 8], strides = [1, 1, 1]} : vector<18x18x8xbf16> to vector<16x16x8xbf16>
    %33 = vector.extract_strided_slice %25 {offsets = [2, 1, 0], sizes = [16, 16, 8], strides = [1, 1, 1]} : vector<18x18x8xbf16> to vector<16x16x8xbf16>
    %34 = vector.extract_strided_slice %25 {offsets = [2, 2, 0], sizes = [16, 16, 8], strides = [1, 1, 1]} : vector<18x18x8xbf16> to vector<16x16x8xbf16>
    %35 = tpu.concatenate %26, %27, %28, %29, %30, %31, %32, %33, %34 in 2 : vector<16x16x8xbf16>, vector<16x16x8xbf16>, vector<16x16x8xbf16>, vector<16x16x8xbf16>, vector<16x16x8xbf16>, vector<16x16x8xbf16>, vector<16x16x8xbf16>, vector<16x16x8xbf16>, vector<16x16x8xbf16> -> vector<16x16x72xbf16>
    %36 = vector.shape_cast %35 : vector<16x16x72xbf16> to vector<256x72xbf16>
    %c0_10 = arith.constant 0 : index
    %c0_11 = arith.constant 0 : index
    %37 = vector.load %arg3[%c0_10, %c0_11] : memref<72x8xbf16, #tpu.memory_space<vmem>>, vector<72x8xbf16>
    %cst_12 = arith.constant dense<0.000000e+00> : vector<256x8xf32>
    %38 = tpu.matmul %36, %37, %cst_12 {dimension_numbers = #tpu.dot_dimension_numbers<[1], [0], [0], [1], [0, 0, 1, 1], [], []>} : vector<256x72xbf16>, vector<72x8xbf16>, vector<256x8xf32> -> vector<256x8xf32>
    %c0_13 = arith.constant 0 : index
    %c0_14 = arith.constant 0 : index
    %39 = vector.load %arg5[%c0_13, %c0_14] : memref<1x8xf32, #tpu.memory_space<vmem>>, vector<1x8xf32>
    %40 = vector.broadcast %39 : vector<1x8xf32> to vector<256x8xf32>
    %41 = arith.addf %38, %40 : vector<256x8xf32>
    %cst_15 = arith.constant 0.000000e+00 : f32
    %42 = vector.broadcast %cst_15 : f32 to vector<256x8xf32>
    %43 = arith.maximumf %41, %42 : vector<256x8xf32>
    %44 = vector.shape_cast %43 : vector<256x8xf32> to vector<16x16x8xf32>
    %c0_16 = arith.constant 0 : index
    %c0_17 = arith.constant 0 : index
    %c0_18 = arith.constant 0 : index
    %c0_19 = arith.constant 0 : index
    %45 = vector.load %arg6[%c0_16, %c0_17, %c0_18, %c0_19] : memref<1x16x16x8xf32, #tpu.memory_space<vmem>>, vector<1x16x16x8xf32>
    %46 = vector.shape_cast %45 : vector<1x16x16x8xf32> to vector<16x16x8xf32>
    %47 = vector.shape_cast %44 : vector<16x16x8xf32> to vector<1x16x16x8xf32>
    tpu.vector_store %arg6[%c0_16, %c0_17, %c0_18, %c0_19], %47 {strides = array<i32>} : memref<1x16x16x8xf32, #tpu.memory_space<vmem>>, vector<1x16x16x8xf32>,
    return
  }
  func.func @transform_0(%arg0: i32) -> (i32, i32, i32, i32) {
    %c0_i32 = arith.constant 0 : i32
    %c0_i32_0 = arith.constant 0 : i32
    %c0_i32_1 = arith.constant 0 : i32
    %c0_i32_2 = arith.constant 0 : i32
    return %arg0, %c0_i32, %c0_i32_0, %c0_i32_1 : i32, i32, i32, i32
  }
  func.func @transform_1(%arg0: i32) -> (i32, i32) {
    %c0_i32 = arith.constant 0 : i32
    %c0_i32_0 = arith.constant 0 : i32
    %c0_i32_1 = arith.constant 0 : i32
    return %c0_i32, %c0_i32_0 : i32, i32
  }
  func.func @transform_2(%arg0: i32) -> (i32, i32) {
    %c0_i32 = arith.constant 0 : i32
    %c0_i32_0 = arith.constant 0 : i32
    %c0_i32_1 = arith.constant 0 : i32
    return %c0_i32, %c0_i32_0 : i32, i32
  }
  func.func @transform_3(%arg0: i32) -> (i32, i32) {
    %c0_i32 = arith.constant 0 : i32
    %c0_i32_0 = arith.constant 0 : i32
    %c0_i32_1 = arith.constant 0 : i32
    return %c0_i32, %c0_i32_0 : i32, i32
  }
  func.func @transform_4(%arg0: i32) -> (i32, i32) {
    %c0_i32 = arith.constant 0 : i32
    %c0_i32_0 = arith.constant 0 : i32
    %c0_i32_1 = arith.constant 0 : i32
    return %c0_i32, %c0_i32_0 : i32, i32
  }
  func.func @transform_5(%arg0: i32) -> (i32, i32, i32, i32) {
    %c0_i32 = arith.constant 0 : i32
    %c0_i32_0 = arith.constant 0 : i32
    %c0_i32_1 = arith.constant 0 : i32
    %c0_i32_2 = arith.constant 0 : i32
    return %arg0, %c0_i32, %c0_i32_0, %c0_i32_1 : i32, i32, i32, i32
  }
}

</mosaic_0001>

<llo_original>
// kernel: multi_conv_forward.1
$region0: #{multi_conv_forward.1}
  #allocation0 [shape = 'u32[]', space=smem, size = 0x4, offset = 0x4, fixed_abs, tag = 'smem constant byte address 0x4 - core index']
  #allocation1 [shape = 'u32[144,128]{1,0:T(1,128)}', space=vmem, size = 0x12000, scoped, tag = 'internal scratch']
  %s0 = inlined_call_operand.vmem [shape: bf16[2,18,18,4], index: 0, kind: input, shape index: {}]
  %s1 = inlined_call_operand.vmem [shape: bf16[36,8], index: 1, kind: input, shape index: {}]
  %s2 = inlined_call_operand.vmem [shape: bf16[72,8], index: 2, kind: input, shape index: {}]
  %s3 = inlined_call_operand.vmem [shape: f32[1,8], index: 3, kind: input, shape index: {}]
  %s4 = inlined_call_operand.vmem [shape: f32[1,8], index: 4, kind: input, shape index: {}]
  %s5 = inlined_call_operand.vmem [shape: f32[2,16,16,8], index: 5, kind: output, shape index: {}]
  %s6 = sld [smem:[#allocation0]]
  $region53: #{multi_conv_forward.1} parent=0
    _
  %s8 = ssub.s32 1, %s6
  %s9 = scalar_select 0, %s8, %s6
  loop: start=0, step=1, limit=4
  $region2: #{multi_conv_forward.1} parent=0 // loop_pre_header
    _
  $region3: #{multi_conv_forward.1} parent=0 // loop_header
    %s11 = sphi 0, %s15
    %p12 = scmp.ge.s32.totalorder %s11, 4
    %s21 = sphi 0, %s23
    %s24 = sphi 0, %s21
    %s25 = sphi 0, %s24
    %s41 = sphi 0, %s25
    %s45 = sphi 0, %s45
    %s47 = sphi 0, %s45
    %s48 = sphi 0, %s47
    %s62 = sphi 0, %s48
    %s66 = sphi 0, %s66
    %s68 = sphi 0, %s66
    %s69 = sphi 0, %s68
    %s83 = sphi 0, %s69
    %s87 = sphi 0, %s87
    %s89 = sphi 0, %s87
    %s90 = sphi 0, %s89
    %s104 = sphi 0, %s90
    %s108 = sphi 0, %s108
    %s110 = sphi 0, %s108
    %s111 = sphi 0, %s110
    %s125 = sphi 0, %s111
    %s131 = sphi 0, %s133
    %s134 = sphi 0, %s131
    %s135 = sphi 0, %s134
    %s151 = sphi 0, %s135
  $region4: #{multi_conv_forward.1} parent=0 // loop_header_branch
    %14 = sbr.rel (%p12) target = $region8
  $region5: #{multi_conv_forward.1} parent=0 // loop_body
    %s16 = ssub.s32 %s11, 1
    %s17 = ssub.s32 %s11, 2
    %s18 = sadd.s32 %s11, 1
    %s19 = ssub.s32 %s11, %s18
    %p20 = scmp.eq.s32.totalorder %s19, 0
    %s22 = sadd.s32 %s21, 1
    %s23 = scalar_select %p20, %s21, %s22
    %p26 = pneg %p20
    %p27 = scmp.eq.s32.totalorder %s11, 1
    %p28 = por %p26, %p27
    %p29 = scmp.ne.s32.totalorder %s21, %s24
    %p30 = scmp.eq.s32.totalorder %s11, 0
    %p31 = por %p29, %p30
    %p32 = scmp.ne.s32.totalorder %s21, %s24
    %p33 = scmp.eq.s32.totalorder %s16, 1
    %p34 = por %p32, %p33
    %p35 = scmp.ne.s32.totalorder %s24, %s25
    %p36 = scmp.eq.s32.totalorder %s16, 0
    %p37 = por %p35, %p36
    %p38 = scmp.ne.s32.totalorder %s24, %s25
    %p39 = scmp.eq.s32.totalorder %s17, 1
    %p40 = por %p38, %p39
    %p42 = scmp.ne.s32.totalorder %s25, %s41
    %p43 = scmp.eq.s32.totalorder %s17, 0
    %p44 = por %p42, %p43
    %s46 = sadd.s32 %s45, 1
    %p49 = scmp.eq.s32.totalorder %s11, 1
    %p50 = scmp.ne.s32.totalorder %s45, %s47
    %p51 = scmp.eq.s32.totalorder %s11, 0
    %p52 = por %p50, %p51
    %p53 = scmp.ne.s32.totalorder %s45, %s47
    %p54 = scmp.eq.s32.totalorder %s16, 1
    %p55 = por %p53, %p54
    %p56 = scmp.ne.s32.totalorder %s47, %s48
    %p57 = scmp.eq.s32.totalorder %s16, 0
    %p58 = por %p56, %p57
    %p59 = scmp.ne.s32.totalorder %s47, %s48
    %p60 = scmp.eq.s32.totalorder %s17, 1
    %p61 = por %p59, %p60
    %p63 = scmp.ne.s32.totalorder %s48, %s62
    %p64 = scmp.eq.s32.totalorder %s17, 0
    %p65 = por %p63, %p64
    %s67 = sadd.s32 %s66, 1
    %p70 = scmp.eq.s32.totalorder %s11, 1
    %p71 = scmp.ne.s32.totalorder %s66, %s68
    %p72 = scmp.eq.s32.totalorder %s11, 0
    %p73 = por %p71, %p72
    %p74 = scmp.ne.s32.totalorder %s66, %s68
    %p75 = scmp.eq.s32.totalorder %s16, 1
    %p76 = por %p74, %p75
    %p77 = scmp.ne.s32.totalorder %s68, %s69
    %p78 = scmp.eq.s32.totalorder %s16, 0
    %p79 = por %p77, %p78
    %p80 = scmp.ne.s32.totalorder %s68, %s69
    %p81 = scmp.eq.s32.totalorder %s17, 1
    %p82 = por %p80, %p81
    %p84 = scmp.ne.s32.totalorder %s69, %s83
    %p85 = scmp.eq.s32.totalorder %s17, 0
    %p86 = por %p84, %p85
    %s88 = sadd.s32 %s87, 1
    %p91 = scmp.eq.s32.totalorder %s11, 1
    %p92 = scmp.ne.s32.totalorder %s87, %s89
    %p93 = scmp.eq.s32.totalorder %s11, 0
    %p94 = por %p92, %p93
    %p95 = scmp.ne.s32.totalorder %s87, %s89
    %p96 = scmp.eq.s32.totalorder %s16, 1
    %p97 = por %p95, %p96
    %p98 = scmp.ne.s32.totalorder %s89, %s90
    %p99 = scmp.eq.s32.totalorder %s16, 0
    %p100 = por %p98, %p99
    %p101 = scmp.ne.s32.totalorder %s89, %s90
    %p102 = scmp.eq.s32.totalorder %s17, 1
    %p103 = por %p101, %p102
    %p105 = scmp.ne.s32.totalorder %s90, %s104
    %p106 = scmp.eq.s32.totalorder %s17, 0
    %p107 = por %p105, %p106
    %s109 = sadd.s32 %s108, 1
    %p112 = scmp.eq.s32.totalorder %s11, 1
    %p113 = scmp.ne.s32.totalorder %s108, %s110
    %p114 = scmp.eq.s32.totalorder %s11, 0
    %p115 = por %p113, %p114
    %p116 = scmp.ne.s32.totalorder %s108, %s110
    %p117 = scmp.eq.s32.totalorder %s16, 1
    %p118 = por %p116, %p117
    %p119 = scmp.ne.s32.totalorder %s110, %s111
    %p120 = scmp.eq.s32.totalorder %s16, 0
    %p121 = por %p119, %p120
    %p122 = scmp.ne.s32.totalorder %s110, %s111
    %p123 = scmp.eq.s32.totalorder %s17, 1
    %p124 = por %p122, %p123
    %p126 = scmp.ne.s32.totalorder %s111, %s125
    %p127 = scmp.eq.s32.totalorder %s17, 0
    %p128 = por %p126, %p127
    %s129 = ssub.s32 %s11, %s18
    %p130 = scmp.eq.s32.totalorder %s129, 0
    %s132 = sadd.s32 %s131, 1
    %s133 = scalar_select %p130, %s131, %s132
    %p136 = pneg %p130
    %p137 = scmp.eq.s32.totalorder %s11, 1
    %p138 = por %p136, %p137
    %p139 = scmp.ne.s32.totalorder %s131, %s134
    %p140 = scmp.eq.s32.totalorder %s11, 0
    %p141 = por %p139, %p140
    %p142 = scmp.ne.s32.totalorder %s131, %s134
    %p143 = scmp.eq.s32.totalorder %s16, 1
    %p144 = por %p142, %p143
    %p145 = scmp.ne.s32.totalorder %s134, %s135
    %p146 = scmp.eq.s32.totalorder %s16, 0
    %p147 = por %p145, %p146
    %p148 = scmp.ne.s32.totalorder %s134, %s135
    %p149 = scmp.eq.s32.totalorder %s17, 1
    %p150 = por %p148, %p149
    %p152 = scmp.ne.s32.totalorder %s135, %s151
    %p153 = scmp.eq.s32.totalorder %s17, 0
    %p154 = por %p152, %p153
    %p155 = scmp.le.s32.totalorder 1, %s11
    %p156 = scmp.lt.s32.totalorder %s11, 3
    %p157 = pnand %p155, %p156
    %p158 = pneg %p157
    // Predicated region
    $region9: #{multi_conv_forward.1} parent=5 // pred_check
      _
    $region10: #{multi_conv_forward.1} parent=5 // pred_check_branch
      %160 = sbr.rel (%p157) target = $region12
    $region11: #{multi_conv_forward.1} parent=5 // pred_region
      %s161 = ssub.s32 %s11, 1
      // Predicated region
      $region13: #{multi_conv_forward.1} parent=11 // pred_check
        %p162 = pneg %p58
      $region14: #{multi_conv_forward.1} parent=11 // pred_check_branch
        %164 = sbr.rel (%p162) target = $region16
      $region15: #{multi_conv_forward.1} parent=11 // pred_region
        _
      $region16: #{multi_conv_forward.1} parent=11 // pred_fallthru
        _
      // Predicated region
      $region17: #{multi_conv_forward.1} parent=11 // pred_check
        %p165 = pneg %p79
      $region18: #{multi_conv_forward.1} parent=11 // pred_check_branch
        %167 = sbr.rel (%p165) target = $region20
      $region19: #{multi_conv_forward.1} parent=11 // pred_region
        _
      $region20: #{multi_conv_forward.1} parent=11 // pred_fallthru
        _
      // Predicated region
      $region21: #{multi_conv_forward.1} parent=11 // pred_check
        %p168 = pneg %p100
      $region22: #{multi_conv_forward.1} parent=11 // pred_check_branch
        %170 = sbr.rel (%p168) target = $region24
      $region23: #{multi_conv_forward.1} parent=11 // pred_region
        _
      $region24: #{multi_conv_forward.1} parent=11 // pred_fallthru
        _
      // Predicated region
      $region25: #{multi_conv_forward.1} parent=11 // pred_check
        %p171 = pneg %p121
      $region26: #{multi_conv_forward.1} parent=11 // pred_check_branch
        %173 = sbr.rel (%p171) target = $region28
      $region27: #{multi_conv_forward.1} parent=11 // pred_region
        _
      $region28: #{multi_conv_forward.1} parent=11 // pred_fallthru
        _
    $region12: #{multi_conv_forward.1} parent=5 // pred_fallthru
      _
    %p174 = scmp.lt.s32.totalorder %s11, 2
    // Predicated region
    $region29: #{multi_conv_forward.1} parent=5 // pred_check
      %p175 = pneg %p174
    $region30: #{multi_conv_forward.1} parent=5 // pred_check_branch
      %177 = sbr.rel (%p175) target = $region32
    $region31: #{multi_conv_forward.1} parent=5 // pred_region
      // Predicated region
      $region33: #{multi_conv_forward.1} parent=31 // pred_check
        %p178 = pneg %p31
      $region34: #{multi_conv_forward.1} parent=31 // pred_check_branch
        %180 = sbr.rel (%p178) target = $region36
      $region35: #{multi_conv_forward.1} parent=31 // pred_region
        %p181 = scmp.lt.s32.totalorder %s11, 1
        %s182 = scalar_select %p181, %s11, 1
        %s183 = smul.addr %s182, 54
        %s184 = smul.addr %s183, 4
        %s185 = scalar_lea.vmem %s0, %s184
      $region36: #{multi_conv_forward.1} parent=31 // pred_fallthru
        _
    $region32: #{multi_conv_forward.1} parent=5 // pred_fallthru
      _
    %p186 = scmp.le.s32.totalorder 1, %s11
    %p187 = scmp.lt.s32.totalorder %s11, 3
    %p188 = pnand %p186, %p187
    %p189 = pneg %p188
    // Predicated region
    $region37: #{multi_conv_forward.1} parent=5 // pred_check
      _
    $region38: #{multi_conv_forward.1} parent=5 // pred_check_branch
      %191 = sbr.rel (%p188) target = $region40
    $region39: #{multi_conv_forward.1} parent=5 // pred_region
      %s192 = ssub.s32 %s11, 1
      %p193 = scmp.lt.s32.totalorder %s16, 1
      %s194 = scalar_select %p193, %s16, 1
      %s195 = smul.addr %s194, 54
      %s196 = smul.addr %s195, 4
      %s197 = scalar_lea.vmem %s0, %s196
      %p198 = pneg %p37
      %p199 = pneg %p34
      %p200 = pneg %p58
      %p201 = pneg %p55
      %p202 = pneg %p79
      %p203 = pneg %p76
      %p204 = pneg %p100
      %p205 = pneg %p97
      %p206 = pneg %p121
      %p207 = pneg %p118
      %p208 = pneg %p147
      %p209 = pneg %p144
      %p210 = scmp.lt.s32.totalorder %s16, 1
      %s211 = scalar_select %p210, %s16, 1
      %s212 = smul.addr %s211, 32
      %s213 = smul.addr %s212, 8
      %s214 = scalar_lea.vmem %s5, %s213
      %p215 = scmp.lt.s32.totalorder %s16, 1
      %s216 = scalar_select %p215, %s16, 1
      %s217 = smul.addr %s216, 54
      %s218 = smul.addr %s217, 4
      %s219 = scalar_lea.vmem %s0, %s218
      %p220 = scmp.lt.s32.totalorder %s16, 1
      %s221 = scalar_select %p220, %s16, 1
      %s222 = smul.addr %s221, 32
      %s223 = smul.addr %s222, 8
      %s224 = scalar_lea.vmem %s5, %s223
      %v226 = vld [vmem:[%s219] sm:$0xf]
      %v227 = vld [vmem:[%s219 + $0x4] sm:$0xf]
      %v228 = vld [vmem:[%s219 + $0x8] sm:$0x1]
      %v229 = vld [vmem:[%s219 + $0xc] sm:$0xf]
      %v230 = vld [vmem:[%s219 + $0x10] sm:$0xf]
      %v231 = vld [vmem:[%s219 + $0x14] sm:$0x1]
      %v232 = vld [vmem:[%s219 + $0x18] sm:$0xf]
      %v233 = vld [vmem:[%s219 + $0x1c] sm:$0xf]
      %v234 = vld [vmem:[%s219 + $0x20] sm:$0x1]
      %v235 = vld [vmem:[%s219 + $0x24] sm:$0xf]
      %v236 = vld [vmem:[%s219 + $0x28] sm:$0xf]
      %v237 = vld [vmem:[%s219 + $0x2c] sm:$0x1]
      %v238 = vld [vmem:[%s219 + $0x30] sm:$0xf]
      %v239 = vld [vmem:[%s219 + $0x34] sm:$0xf]
      %v240 = vld [vmem:[%s219 + $0x38] sm:$0x1]
      %v241 = vld [vmem:[%s219 + $0x3c] sm:$0xf]
      %v242 = vld [vmem:[%s219 + $0x40] sm:$0xf]
      %v243 = vld [vmem:[%s219 + $0x44] sm:$0x1]
      %v244 = vld [vmem:[%s219 + $0x48] sm:$0xf]
      %v245 = vld [vmem:[%s219 + $0x4c] sm:$0xf]
      %v246 = vld [vmem:[%s219 + $0x50] sm:$0x1]
      %v247 = vld [vmem:[%s219 + $0x54] sm:$0xf]
      %v248 = vld [vmem:[%s219 + $0x58] sm:$0xf]
      %v249 = vld [vmem:[%s219 + $0x5c] sm:$0x1]
      %v250 = vld [vmem:[%s219 + $0x60] sm:$0xf]
      %v251 = vld [vmem:[%s219 + $0x64] sm:$0xf]
      %v252 = vld [vmem:[%s219 + $0x68] sm:$0x1]
      %v253 = vld [vmem:[%s219 + $0x6c] sm:$0xf]
      %v254 = vld [vmem:[%s219 + $0x70] sm:$0xf]
      %v255 = vld [vmem:[%s219 + $0x74] sm:$0x1]
      %v256 = vld [vmem:[%s219 + $0x78] sm:$0xf]
      %v257 = vld [vmem:[%s219 + $0x7c] sm:$0xf]
      %v258 = vld [vmem:[%s219 + $0x80] sm:$0x1]
      %v259 = vld [vmem:[%s219 + $0x84] sm:$0xf]
      %v260 = vld [vmem:[%s219 + $0x88] sm:$0xf]
      %v261 = vld [vmem:[%s219 + $0x8c] sm:$0x1]
      %v262 = vld [vmem:[%s219 + $0x90] sm:$0xf]
      %v263 = vld [vmem:[%s219 + $0x94] sm:$0xf]
      %v264 = vld [vmem:[%s219 + $0x98] sm:$0x1]
      %v265 = vld [vmem:[%s219 + $0x9c] sm:$0xf]
      %v266 = vld [vmem:[%s219 + $0xa0] sm:$0xf]
      %v267 = vld [vmem:[%s219 + $0xa4] sm:$0x1]
      %v268 = vld [vmem:[%s219 + $0xa8] sm:$0xf]
      %v269 = vld [vmem:[%s219 + $0xac] sm:$0xf]
      %v270 = vld [vmem:[%s219 + $0xb0] sm:$0x1]
      %v271 = vld [vmem:[%s219 + $0xb4] sm:$0xf]
      %v272 = vld [vmem:[%s219 + $0xb8] sm:$0xf]
      %v273 = vld [vmem:[%s219 + $0xbc] sm:$0x1]
      %v274 = vld [vmem:[%s219 + $0xc0] sm:$0xf]
      %v275 = vld [vmem:[%s219 + $0xc4] sm:$0xf]
      %v276 = vld [vmem:[%s219 + $0xc8] sm:$0x1]
      %v277 = vld [vmem:[%s219 + $0xcc] sm:$0xf]
      %v278 = vld [vmem:[%s219 + $0xd0] sm:$0xf]
      %v279 = vld [vmem:[%s219 + $0xd4] sm:$0x1]
      %v312 = vunpack.c.l.b16 %v226
      %v313 = vunpack.c.l.b16 %v227
      %v314 = vunpack.c.l.b16 %v229
      %v315 = vunpack.c.l.b16 %v230
      %v316 = vunpack.c.l.b16 %v232
      %v317 = vunpack.c.l.b16 %v233
      %v318 = vunpack.c.l.b16 %v235
      %v319 = vunpack.c.l.b16 %v236
      %v320 = vunpack.c.l.b16 %v238
      %v321 = vunpack.c.l.b16 %v239
      %v322 = vunpack.c.l.b16 %v241
      %v323 = vunpack.c.l.b16 %v242
      %v324 = vunpack.c.l.b16 %v244
      %v325 = vunpack.c.l.b16 %v245
      %v326 = vunpack.c.l.b16 %v247
      %v327 = vunpack.c.l.b16 %v248
      %v328 = vunpack.c.l.b16 %v250
      %v329 = vunpack.c.l.b16 %v251
      %v330 = vunpack.c.l.b16 %v253
      %v331 = vunpack.c.l.b16 %v254
      %v332 = vunpack.c.l.b16 %v256
      %v333 = vunpack.c.l.b16 %v257
      %v334 = vunpack.c.l.b16 %v259
      %v335 = vunpack.c.l.b16 %v260
      %v336 = vunpack.c.l.b16 %v262
      %v337 = vunpack.c.l.b16 %v263
      %v338 = vunpack.c.l.b16 %v265
      %v339 = vunpack.c.l.b16 %v266
      %v340 = vunpack.c.l.b16 %v268
      %v341 = vunpack.c.l.b16 %v269
      %v342 = vunpack.c.l.b16 %v271
      %v343 = vunpack.c.l.b16 %v272
      %v344 = vpack.c.b16 %v313, %v312
      %v345 = vpack.c.b16 %v315, %v314
      %v346 = vpack.c.b16 %v317, %v316
      %v347 = vpack.c.b16 %v319, %v318
      %v348 = vpack.c.b16 %v321, %v320
      %v349 = vpack.c.b16 %v323, %v322
      %v350 = vpack.c.b16 %v325, %v324
      %v351 = vpack.c.b16 %v327, %v326
      %v352 = vpack.c.b16 %v329, %v328
      %v353 = vpack.c.b16 %v331, %v330
      %v354 = vpack.c.b16 %v333, %v332
      %v355 = vpack.c.b16 %v335, %v334
      %v356 = vpack.c.b16 %v337, %v336
      %v357 = vpack.c.b16 %v339, %v338
      %v358 = vpack.c.b16 %v341, %v340
      %v359 = vpack.c.b16 %v343, %v342
      %v376 = vunpack.c.l.b16 %v228
      %v377 = vunpack.c.l.b16 %v231
      %v378 = vunpack.c.l.b16 %v234
      %v379 = vunpack.c.l.b16 %v237
      %v380 = vunpack.c.l.b16 %v240
      %v381 = vunpack.c.l.b16 %v243
      %v382 = vunpack.c.l.b16 %v246
      %v383 = vunpack.c.l.b16 %v249
      %v384 = vunpack.c.l.b16 %v252
      %v385 = vunpack.c.l.b16 %v255
      %v386 = vunpack.c.l.b16 %v258
      %v387 = vunpack.c.l.b16 %v261
      %v388 = vunpack.c.l.b16 %v264
      %v389 = vunpack.c.l.b16 %v267
      %v390 = vunpack.c.l.b16 %v270
      %v391 = vunpack.c.l.b16 %v273
      %v392 = vpack.c.b16 %v376, %v376
      %v393 = vpack.c.b16 %v377, %v377
      %v394 = vpack.c.b16 %v378, %v378
      %v395 = vpack.c.b16 %v379, %v379
      %v396 = vpack.c.b16 %v380, %v380
      %v397 = vpack.c.b16 %v381, %v381
      %v398 = vpack.c.b16 %v382, %v382
      %v399 = vpack.c.b16 %v383, %v383
      %v400 = vpack.c.b16 %v384, %v384
      %v401 = vpack.c.b16 %v385, %v385
      %v402 = vpack.c.b16 %v386, %v386
      %v403 = vpack.c.b16 %v387, %v387
      %v404 = vpack.c.b16 %v388, %v388
      %v405 = vpack.c.b16 %v389, %v389
      %v406 = vpack.c.b16 %v390, %v390
      %v407 = vpack.c.b16 %v391, %v391
      %vm408 = vsmask.f32 7424
      %v410 = vshrl.u32 %v344, 16
      %v412 = vshll.u32 %v344, 16
      %v414 = vrot.slane %v412, 1
      %v415 = vor.u32 %v410, %v414
      %v417 = vshll.u32 %v392, 16
      %v419 = vrot.slane %v417, 1
      %v420 = vsel %vm408, %v415, %v419
      %v422 = vshrl.u32 %v345, 16
      %v424 = vshll.u32 %v345, 16
      %v426 = vrot.slane %v424, 1
      %v427 = vor.u32 %v422, %v426
      %v429 = vshll.u32 %v393, 16
      %v431 = vrot.slane %v429, 1
      %v432 = vsel %vm408, %v427, %v431
      %v434 = vshrl.u32 %v346, 16
      %v436 = vshll.u32 %v346, 16
      %v438 = vrot.slane %v436, 1
      %v439 = vor.u32 %v434, %v438
      %v441 = vshll.u32 %v394, 16
      %v443 = vrot.slane %v441, 1
      %v444 = vsel %vm408, %v439, %v443
      %v446 = vshrl.u32 %v347, 16
      %v448 = vshll.u32 %v347, 16
      %v450 = vrot.slane %v448, 1
      %v451 = vor.u32 %v446, %v450
      %v453 = vshll.u32 %v395, 16
      %v455 = vrot.slane %v453, 1
      %v456 = vsel %vm408, %v451, %v455
      %v458 = vshrl.u32 %v348, 16
      %v460 = vshll.u32 %v348, 16
      %v462 = vrot.slane %v460, 1
      %v463 = vor.u32 %v458, %v462
      %v465 = vshll.u32 %v396, 16
      %v467 = vrot.slane %v465, 1
      %v468 = vsel %vm408, %v463, %v467
      %v470 = vshrl.u32 %v349, 16
      %v472 = vshll.u32 %v349, 16
      %v474 = vrot.slane %v472, 1
      %v475 = vor.u32 %v470, %v474
      %v477 = vshll.u32 %v397, 16
      %v479 = vrot.slane %v477, 1
      %v480 = vsel %vm408, %v475, %v479
      %v482 = vshrl.u32 %v350, 16
      %v484 = vshll.u32 %v350, 16
      %v486 = vrot.slane %v484, 1
      %v487 = vor.u32 %v482, %v486
      %v489 = vshll.u32 %v398, 16
      %v491 = vrot.slane %v489, 1
      %v492 = vsel %vm408, %v487, %v491
      %v494 = vshrl.u32 %v351, 16
      %v496 = vshll.u32 %v351, 16
      %v498 = vrot.slane %v496, 1
      %v499 = vor.u32 %v494, %v498
      %v501 = vshll.u32 %v399, 16
      %v503 = vrot.slane %v501, 1
      %v504 = vsel %vm408, %v499, %v503
      %v506 = vshrl.u32 %v352, 16
      %v508 = vshll.u32 %v352, 16
      %v510 = vrot.slane %v508, 1
      %v511 = vor.u32 %v506, %v510
      %v513 = vshll.u32 %v400, 16
      %v515 = vrot.slane %v513, 1
      %v516 = vsel %vm408, %v511, %v515
      %v518 = vshrl.u32 %v353, 16
      %v520 = vshll.u32 %v353, 16
      %v522 = vrot.slane %v520, 1
      %v523 = vor.u32 %v518, %v522
      %v525 = vshll.u32 %v401, 16
      %v527 = vrot.slane %v525, 1
      %v528 = vsel %vm408, %v523, %v527
      %v530 = vshrl.u32 %v354, 16
      %v532 = vshll.u32 %v354, 16
      %v534 = vrot.slane %v532, 1
      %v535 = vor.u32 %v530, %v534
      %v537 = vshll.u32 %v402, 16
      %v539 = vrot.slane %v537, 1
      %v540 = vsel %vm408, %v535, %v539
      %v542 = vshrl.u32 %v355, 16
      %v544 = vshll.u32 %v355, 16
      %v546 = vrot.slane %v544, 1
      %v547 = vor.u32 %v542, %v546
      %v549 = vshll.u32 %v403, 16
      %v551 = vrot.slane %v549, 1
      %v552 = vsel %vm408, %v547, %v551
      %v554 = vshrl.u32 %v356, 16
      %v556 = vshll.u32 %v356, 16
      %v558 = vrot.slane %v556, 1
      %v559 = vor.u32 %v554, %v558
      %v561 = vshll.u32 %v404, 16
      %v563 = vrot.slane %v561, 1
      %v564 = vsel %vm408, %v559, %v563
      %v566 = vshrl.u32 %v357, 16
      %v568 = vshll.u32 %v357, 16
      %v570 = vrot.slane %v568, 1
      %v571 = vor.u32 %v566, %v570
      %v573 = vshll.u32 %v405, 16
      %v575 = vrot.slane %v573, 1
      %v576 = vsel %vm408, %v571, %v575
      %v578 = vshrl.u32 %v358, 16
      %v580 = vshll.u32 %v358, 16
      %v582 = vrot.slane %v580, 1
      %v583 = vor.u32 %v578, %v582
      %v585 = vshll.u32 %v406, 16
      %v587 = vrot.slane %v585, 1
      %v588 = vsel %vm408, %v583, %v587
      %v590 = vshrl.u32 %v359, 16
      %v592 = vshll.u32 %v359, 16
      %v594 = vrot.slane %v592, 1
      %v595 = vor.u32 %v590, %v594
      %v597 = vshll.u32 %v407, 16
      %v599 = vrot.slane %v597, 1
      %v600 = vsel %vm408, %v595, %v599
      %601 = vrot.lane.b32.xlu0 %v420, 4
      %v602 = vpop.permute.xlu0 %601
      %603 = vrot.lane.b32.xlu0 %v432, 4
      %v604 = vpop.permute.xlu0 %603
      %605 = vrot.lane.b32.xlu0 %v444, 4
      %v606 = vpop.permute.xlu0 %605
      %607 = vrot.lane.b32.xlu0 %v456, 4
      %v608 = vpop.permute.xlu0 %607
      %609 = vrot.lane.b32.xlu0 %v468, 4
      %v610 = vpop.permute.xlu0 %609
      %611 = vrot.lane.b32.xlu0 %v480, 4
      %v612 = vpop.permute.xlu0 %611
      %613 = vrot.lane.b32.xlu0 %v492, 4
      %v614 = vpop.permute.xlu0 %613
      %615 = vrot.lane.b32.xlu0 %v504, 4
      %v616 = vpop.permute.xlu0 %615
      %617 = vrot.lane.b32.xlu0 %v516, 4
      %v618 = vpop.permute.xlu0 %617
      %619 = vrot.lane.b32.xlu0 %v528, 4
      %v620 = vpop.permute.xlu0 %619
      %621 = vrot.lane.b32.xlu0 %v540, 4
      %v622 = vpop.permute.xlu0 %621
      %623 = vrot.lane.b32.xlu0 %v552, 4
      %v624 = vpop.permute.xlu0 %623
      %625 = vrot.lane.b32.xlu0 %v564, 4
      %v626 = vpop.permute.xlu0 %625
      %627 = vrot.lane.b32.xlu0 %v576, 4
      %v628 = vpop.permute.xlu0 %627
      %629 = vrot.lane.b32.xlu0 %v588, 4
      %v630 = vpop.permute.xlu0 %629
      %631 = vrot.lane.b32.xlu0 %v600, 4
      %v632 = vpop.permute.xlu0 %631
      %vm633 = vcmask 1046528
      %v634 = vrot.slane %v344, 1
      %v635 = vrot.slane %v392, 1
      %v636 = vsel %vm633, %v634, %v635
      %v637 = vrot.slane %v345, 1
      %v638 = vrot.slane %v393, 1
      %v639 = vsel %vm633, %v637, %v638
      %v640 = vrot.slane %v346, 1
      %v641 = vrot.slane %v394, 1
      %v642 = vsel %vm633, %v640, %v641
      %v643 = vrot.slane %v347, 1
      %v644 = vrot.slane %v395, 1
      %v645 = vsel %vm633, %v643, %v644
      %v646 = vrot.slane %v348, 1
      %v647 = vrot.slane %v396, 1
      %v648 = vsel %vm633, %v646, %v647
      %v649 = vrot.slane %v349, 1
      %v650 = vrot.slane %v397, 1
      %v651 = vsel %vm633, %v649, %v650
      %v652 = vrot.slane %v350, 1
      %v653 = vrot.slane %v398, 1
      %v654 = vsel %vm633, %v652, %v653
      %v655 = vrot.slane %v351, 1
      %v656 = vrot.slane %v399, 1
      %v657 = vsel %vm633, %v655, %v656
      %v658 = vrot.slane %v352, 1
      %v659 = vrot.slane %v400, 1
      %v660 = vsel %vm633, %v658, %v659
      %v661 = vrot.slane %v353, 1
      %v662 = vrot.slane %v401, 1
      %v663 = vsel %vm633, %v661, %v662
      %v664 = vrot.slane %v354, 1
      %v665 = vrot.slane %v402, 1
      %v666 = vsel %vm633, %v664, %v665
      %v667 = vrot.slane %v355, 1
      %v668 = vrot.slane %v403, 1
      %v669 = vsel %vm633, %v667, %v668
      %v670 = vrot.slane %v356, 1
      %v671 = vrot.slane %v404, 1
      %v672 = vsel %vm633, %v670, %v671
      %v673 = vrot.slane %v357, 1
      %v674 = vrot.slane %v405, 1
      %v675 = vsel %vm633, %v673, %v674
      %v676 = vrot.slane %v358, 1
      %v677 = vrot.slane %v406, 1
      %v678 = vsel %vm633, %v676, %v677
      %v679 = vrot.slane %v359, 1
      %v680 = vrot.slane %v407, 1
      %v681 = vsel %vm633, %v679, %v680
      %682 = vrot.lane.b32.xlu0 %v636, 8
      %v683 = vpop.permute.xlu0 %682
      %684 = vrot.lane.b32.xlu0 %v639, 8
      %v685 = vpop.permute.xlu0 %684
      %686 = vrot.lane.b32.xlu0 %v642, 8
      %v687 = vpop.permute.xlu0 %686
      %688 = vrot.lane.b32.xlu0 %v645, 8
      %v689 = vpop.permute.xlu0 %688
      %690 = vrot.lane.b32.xlu0 %v648, 8
      %v691 = vpop.permute.xlu0 %690
      %692 = vrot.lane.b32.xlu0 %v651, 8
      %v693 = vpop.permute.xlu0 %692
      %694 = vrot.lane.b32.xlu0 %v654, 8
      %v695 = vpop.permute.xlu0 %694
      %696 = vrot.lane.b32.xlu0 %v657, 8
      %v697 = vpop.permute.xlu0 %696
      %698 = vrot.lane.b32.xlu0 %v660, 8
      %v699 = vpop.permute.xlu0 %698
      %700 = vrot.lane.b32.xlu0 %v663, 8
      %v701 = vpop.permute.xlu0 %700
      %702 = vrot.lane.b32.xlu0 %v666, 8
      %v703 = vpop.permute.xlu0 %702
      %704 = vrot.lane.b32.xlu0 %v669, 8
      %v705 = vpop.permute.xlu0 %704
      %706 = vrot.lane.b32.xlu0 %v672, 8
      %v707 = vpop.permute.xlu0 %706
      %708 = vrot.lane.b32.xlu0 %v675, 8
      %v709 = vpop.permute.xlu0 %708
      %710 = vrot.lane.b32.xlu0 %v678, 8
      %v711 = vpop.permute.xlu0 %710
      %712 = vrot.lane.b32.xlu0 %v681, 8
      %v713 = vpop.permute.xlu0 %712
      %v716 = vunpack.c.l.b16 %v274
      %v717 = vunpack.c.l.b16 %v275
      %v718 = vpack.c.b16 %v717, %v716
      %719 = vrot.lane.b32.xlu0 %v345, 12
      %v720 = vpop.permute.xlu0 %719
      %721 = vrot.lane.b32.xlu0 %v346, 12
      %v722 = vpop.permute.xlu0 %721
      %723 = vrot.lane.b32.xlu0 %v347, 12
      %v724 = vpop.permute.xlu0 %723
      %725 = vrot.lane.b32.xlu0 %v348, 12
      %v726 = vpop.permute.xlu0 %725
      %727 = vrot.lane.b32.xlu0 %v349, 12
      %v728 = vpop.permute.xlu0 %727
      %729 = vrot.lane.b32.xlu0 %v350, 12
      %v730 = vpop.permute.xlu0 %729
      %731 = vrot.lane.b32.xlu0 %v351, 12
      %v732 = vpop.permute.xlu0 %731
      %733 = vrot.lane.b32.xlu0 %v352, 12
      %v734 = vpop.permute.xlu0 %733
      %735 = vrot.lane.b32.xlu0 %v353, 12
      %v736 = vpop.permute.xlu0 %735
      %737 = vrot.lane.b32.xlu0 %v354, 12
      %v738 = vpop.permute.xlu0 %737
      %739 = vrot.lane.b32.xlu0 %v355, 12
      %v740 = vpop.permute.xlu0 %739
      %741 = vrot.lane.b32.xlu0 %v356, 12
      %v742 = vpop.permute.xlu0 %741
      %743 = vrot.lane.b32.xlu0 %v357, 12
      %v744 = vpop.permute.xlu0 %743
      %745 = vrot.lane.b32.xlu0 %v358, 12
      %v746 = vpop.permute.xlu0 %745
      %747 = vrot.lane.b32.xlu0 %v359, 12
      %v748 = vpop.permute.xlu0 %747
      %749 = vrot.lane.b32.xlu0 %v718, 12
      %v750 = vpop.permute.xlu0 %749
      %v752 = vunpack.c.l.b16 %v276
      %v753 = vpack.c.b16 %v752, %v752
      %v755 = vshrl.u32 %v718, 16
      %v757 = vshll.u32 %v718, 16
      %v759 = vrot.slane %v757, 1
      %v760 = vor.u32 %v755, %v759
      %v762 = vshll.u32 %v753, 16
      %v764 = vrot.slane %v762, 1
      %v765 = vsel %vm408, %v760, %v764
      %766 = vrot.lane.b32.xlu0 %v432, 16
      %v767 = vpop.permute.xlu0 %766
      %768 = vrot.lane.b32.xlu0 %v444, 16
      %v769 = vpop.permute.xlu0 %768
      %770 = vrot.lane.b32.xlu0 %v456, 16
      %v771 = vpop.permute.xlu0 %770
      %772 = vrot.lane.b32.xlu0 %v468, 16
      %v773 = vpop.permute.xlu0 %772
      %774 = vrot.lane.b32.xlu0 %v480, 16
      %v775 = vpop.permute.xlu0 %774
      %776 = vrot.lane.b32.xlu0 %v492, 16
      %v777 = vpop.permute.xlu0 %776
      %778 = vrot.lane.b32.xlu0 %v504, 16
      %v779 = vpop.permute.xlu0 %778
      %780 = vrot.lane.b32.xlu0 %v516, 16
      %v781 = vpop.permute.xlu0 %780
      %782 = vrot.lane.b32.xlu0 %v528, 16
      %v783 = vpop.permute.xlu0 %782
      %784 = vrot.lane.b32.xlu0 %v540, 16
      %v785 = vpop.permute.xlu0 %784
      %786 = vrot.lane.b32.xlu0 %v552, 16
      %v787 = vpop.permute.xlu0 %786
      %788 = vrot.lane.b32.xlu0 %v564, 16
      %v789 = vpop.permute.xlu0 %788
      %790 = vrot.lane.b32.xlu0 %v576, 16
      %v791 = vpop.permute.xlu0 %790
      %792 = vrot.lane.b32.xlu0 %v588, 16
      %v793 = vpop.permute.xlu0 %792
      %794 = vrot.lane.b32.xlu0 %v600, 16
      %v795 = vpop.permute.xlu0 %794
      %796 = vrot.lane.b32.xlu0 %v765, 16
      %v797 = vpop.permute.xlu0 %796
      %v798 = vrot.slane %v718, 1
      %v799 = vrot.slane %v753, 1
      %v800 = vsel %vm633, %v798, %v799
      %801 = vrot.lane.b32.xlu0 %v639, 20
      %v802 = vpop.permute.xlu0 %801
      %803 = vrot.lane.b32.xlu0 %v642, 20
      %v804 = vpop.permute.xlu0 %803
      %805 = vrot.lane.b32.xlu0 %v645, 20
      %v806 = vpop.permute.xlu0 %805
      %807 = vrot.lane.b32.xlu0 %v648, 20
      %v808 = vpop.permute.xlu0 %807
      %809 = vrot.lane.b32.xlu0 %v651, 20
      %v810 = vpop.permute.xlu0 %809
      %811 = vrot.lane.b32.xlu0 %v654, 20
      %v812 = vpop.permute.xlu0 %811
      %813 = vrot.lane.b32.xlu0 %v657, 20
      %v814 = vpop.permute.xlu0 %813
      %815 = vrot.lane.b32.xlu0 %v660, 20
      %v816 = vpop.permute.xlu0 %815
      %817 = vrot.lane.b32.xlu0 %v663, 20
      %v818 = vpop.permute.xlu0 %817
      %819 = vrot.lane.b32.xlu0 %v666, 20
      %v820 = vpop.permute.xlu0 %819
      %821 = vrot.lane.b32.xlu0 %v669, 20
      %v822 = vpop.permute.xlu0 %821
      %823 = vrot.lane.b32.xlu0 %v672, 20
      %v824 = vpop.permute.xlu0 %823
      %825 = vrot.lane.b32.xlu0 %v675, 20
      %v826 = vpop.permute.xlu0 %825
      %827 = vrot.lane.b32.xlu0 %v678, 20
      %v828 = vpop.permute.xlu0 %827
      %829 = vrot.lane.b32.xlu0 %v681, 20
      %v830 = vpop.permute.xlu0 %829
      %831 = vrot.lane.b32.xlu0 %v800, 20
      %v832 = vpop.permute.xlu0 %831
      %v835 = vunpack.c.l.b16 %v277
      %v836 = vunpack.c.l.b16 %v278
      %v837 = vpack.c.b16 %v836, %v835
      %838 = vrot.lane.b32.xlu0 %v346, 24
      %v839 = vpop.permute.xlu0 %838
      %840 = vrot.lane.b32.xlu0 %v347, 24
      %v841 = vpop.permute.xlu0 %840
      %842 = vrot.lane.b32.xlu0 %v348, 24
      %v843 = vpop.permute.xlu0 %842
      %844 = vrot.lane.b32.xlu0 %v349, 24
      %v845 = vpop.permute.xlu0 %844
      %846 = vrot.lane.b32.xlu0 %v350, 24
      %v847 = vpop.permute.xlu0 %846
      %848 = vrot.lane.b32.xlu0 %v351, 24
      %v849 = vpop.permute.xlu0 %848
      %850 = vrot.lane.b32.xlu0 %v352, 24
      %v851 = vpop.permute.xlu0 %850
      %852 = vrot.lane.b32.xlu0 %v353, 24
      %v853 = vpop.permute.xlu0 %852
      %854 = vrot.lane.b32.xlu0 %v354, 24
      %v855 = vpop.permute.xlu0 %854
      %856 = vrot.lane.b32.xlu0 %v355, 24
      %v857 = vpop.permute.xlu0 %856
      %858 = vrot.lane.b32.xlu0 %v356, 24
      %v859 = vpop.permute.xlu0 %858
      %860 = vrot.lane.b32.xlu0 %v357, 24
      %v861 = vpop.permute.xlu0 %860
      %862 = vrot.lane.b32.xlu0 %v358, 24
      %v863 = vpop.permute.xlu0 %862
      %864 = vrot.lane.b32.xlu0 %v359, 24
      %v865 = vpop.permute.xlu0 %864
      %866 = vrot.lane.b32.xlu0 %v718, 24
      %v867 = vpop.permute.xlu0 %866
      %868 = vrot.lane.b32.xlu0 %v837, 24
      %v869 = vpop.permute.xlu0 %868
      %v871 = vunpack.c.l.b16 %v279
      %v872 = vpack.c.b16 %v871, %v871
      %v874 = vshrl.u32 %v837, 16
      %v876 = vshll.u32 %v837, 16
      %v878 = vrot.slane %v876, 1
      %v879 = vor.u32 %v874, %v878
      %v881 = vshll.u32 %v872, 16
      %v883 = vrot.slane %v881, 1
      %v884 = vsel %vm408, %v879, %v883
      %885 = vrot.lane.b32.xlu0 %v444, 28
      %v886 = vpop.permute.xlu0 %885
      %887 = vrot.lane.b32.xlu0 %v456, 28
      %v888 = vpop.permute.xlu0 %887
      %889 = vrot.lane.b32.xlu0 %v468, 28
      %v890 = vpop.permute.xlu0 %889
      %891 = vrot.lane.b32.xlu0 %v480, 28
      %v892 = vpop.permute.xlu0 %891
      %893 = vrot.lane.b32.xlu0 %v492, 28
      %v894 = vpop.permute.xlu0 %893
      %895 = vrot.lane.b32.xlu0 %v504, 28
      %v896 = vpop.permute.xlu0 %895
      %897 = vrot.lane.b32.xlu0 %v516, 28
      %v898 = vpop.permute.xlu0 %897
      %899 = vrot.lane.b32.xlu0 %v528, 28
      %v900 = vpop.permute.xlu0 %899
      %901 = vrot.lane.b32.xlu0 %v540, 28
      %v902 = vpop.permute.xlu0 %901
      %903 = vrot.lane.b32.xlu0 %v552, 28
      %v904 = vpop.permute.xlu0 %903
      %905 = vrot.lane.b32.xlu0 %v564, 28
      %v906 = vpop.permute.xlu0 %905
      %907 = vrot.lane.b32.xlu0 %v576, 28
      %v908 = vpop.permute.xlu0 %907
      %909 = vrot.lane.b32.xlu0 %v588, 28
      %v910 = vpop.permute.xlu0 %909
      %911 = vrot.lane.b32.xlu0 %v600, 28
      %v912 = vpop.permute.xlu0 %911
      %913 = vrot.lane.b32.xlu0 %v765, 28
      %v914 = vpop.permute.xlu0 %913
      %915 = vrot.lane.b32.xlu0 %v884, 28
      %v916 = vpop.permute.xlu0 %915
      %v917 = vrot.slane %v837, 1
      %v918 = vrot.slane %v872, 1
      %v919 = vsel %vm633, %v917, %v918
      %920 = vrot.lane.b32.xlu0 %v642, 32
      %v921 = vpop.permute.xlu0 %920
      %922 = vrot.lane.b32.xlu0 %v645, 32
      %v923 = vpop.permute.xlu0 %922
      %924 = vrot.lane.b32.xlu0 %v648, 32
      %v925 = vpop.permute.xlu0 %924
      %926 = vrot.lane.b32.xlu0 %v651, 32
      %v927 = vpop.permute.xlu0 %926
      %928 = vrot.lane.b32.xlu0 %v654, 32
      %v929 = vpop.permute.xlu0 %928
      %930 = vrot.lane.b32.xlu0 %v657, 32
      %v931 = vpop.permute.xlu0 %930
      %932 = vrot.lane.b32.xlu0 %v660, 32
      %v933 = vpop.permute.xlu0 %932
      %934 = vrot.lane.b32.xlu0 %v663, 32
      %v935 = vpop.permute.xlu0 %934
      %936 = vrot.lane.b32.xlu0 %v666, 32
      %v937 = vpop.permute.xlu0 %936
      %938 = vrot.lane.b32.xlu0 %v669, 32
      %v939 = vpop.permute.xlu0 %938
      %940 = vrot.lane.b32.xlu0 %v672, 32
      %v941 = vpop.permute.xlu0 %940
      %942 = vrot.lane.b32.xlu0 %v675, 32
      %v943 = vpop.permute.xlu0 %942
      %944 = vrot.lane.b32.xlu0 %v678, 32
      %v945 = vpop.permute.xlu0 %944
      %946 = vrot.lane.b32.xlu0 %v681, 32
      %v947 = vpop.permute.xlu0 %946
      %948 = vrot.lane.b32.xlu0 %v800, 32
      %v949 = vpop.permute.xlu0 %948
      %950 = vrot.lane.b32.xlu0 %v919, 32
      %v951 = vpop.permute.xlu0 %950
      %vm952 = vcmask 31744
      %v954 = vsel %vm952, %v344, %v602
      %v956 = vsel %vm952, %v345, %v604
      %v958 = vsel %vm952, %v346, %v606
      %v960 = vsel %vm952, %v347, %v608
      %v962 = vsel %vm952, %v348, %v610
      %v964 = vsel %vm952, %v349, %v612
      %v966 = vsel %vm952, %v350, %v614
      %v968 = vsel %vm952, %v351, %v616
      %v970 = vsel %vm952, %v352, %v618
      %v972 = vsel %vm952, %v353, %v620
      %v974 = vsel %vm952, %v354, %v622
      %v976 = vsel %vm952, %v355, %v624
      %v978 = vsel %vm952, %v356, %v626
      %v980 = vsel %vm952, %v357, %v628
      %v982 = vsel %vm952, %v358, %v630
      %v984 = vsel %vm952, %v359, %v632
      %vm985 = vcmask 64512
      %v987 = vsel %vm985, %v954, %v683
      %v989 = vsel %vm985, %v956, %v685
      %v991 = vsel %vm985, %v958, %v687
      %v993 = vsel %vm985, %v960, %v689
      %v995 = vsel %vm985, %v962, %v691
      %v997 = vsel %vm985, %v964, %v693
      %v999 = vsel %vm985, %v966, %v695
      %v1001 = vsel %vm985, %v968, %v697
      %v1003 = vsel %vm985, %v970, %v699
      %v1005 = vsel %vm985, %v972, %v701
      %v1007 = vsel %vm985, %v974, %v703
      %v1009 = vsel %vm985, %v976, %v705
      %v1011 = vsel %vm985, %v978, %v707
      %v1013 = vsel %vm985, %v980, %v709
      %v1015 = vsel %vm985, %v982, %v711
      %v1017 = vsel %vm985, %v984, %v713
      %vm1018 = vcmask 97280
      %v1020 = vsel %vm1018, %v987, %v720
      %v1022 = vsel %vm1018, %v989, %v722
      %v1024 = vsel %vm1018, %v991, %v724
      %v1026 = vsel %vm1018, %v993, %v726
      %v1028 = vsel %vm1018, %v995, %v728
      %v1030 = vsel %vm1018, %v997, %v730
      %v1032 = vsel %vm1018, %v999, %v732
      %v1034 = vsel %vm1018, %v1001, %v734
      %v1036 = vsel %vm1018, %v1003, %v736
      %v1038 = vsel %vm1018, %v1005, %v738
      %v1040 = vsel %vm1018, %v1007, %v740
      %v1042 = vsel %vm1018, %v1009, %v742
      %v1044 = vsel %vm1018, %v1011, %v744
      %v1046 = vsel %vm1018, %v1013, %v746
      %v1048 = vsel %vm1018, %v1015, %v748
      %v1050 = vsel %vm1018, %v1017, %v750
      %vm1051 = vcmask 130048
      %v1053 = vsel %vm1051, %v1020, %v767
      %v1055 = vsel %vm1051, %v1022, %v769
      %v1057 = vsel %vm1051, %v1024, %v771
      %v1059 = vsel %vm1051, %v1026, %v773
      %v1061 = vsel %vm1051, %v1028, %v775
      %v1063 = vsel %vm1051, %v1030, %v777
      %v1065 = vsel %vm1051, %v1032, %v779
      %v1067 = vsel %vm1051, %v1034, %v781
      %v1069 = vsel %vm1051, %v1036, %v783
      %v1071 = vsel %vm1051, %v1038, %v785
      %v1073 = vsel %vm1051, %v1040, %v787
      %v1075 = vsel %vm1051, %v1042, %v789
      %v1077 = vsel %vm1051, %v1044, %v791
      %v1079 = vsel %vm1051, %v1046, %v793
      %v1081 = vsel %vm1051, %v1048, %v795
      %v1083 = vsel %vm1051, %v1050, %v797
      %vm1084 = vcmask 162816
      %v1086 = vsel %vm1084, %v1053, %v802
      %v1088 = vsel %vm1084, %v1055, %v804
      %v1090 = vsel %vm1084, %v1057, %v806
      %v1092 = vsel %vm1084, %v1059, %v808
      %v1094 = vsel %vm1084, %v1061, %v810
      %v1096 = vsel %vm1084, %v1063, %v812
      %v1098 = vsel %vm1084, %v1065, %v814
      %v1100 = vsel %vm1084, %v1067, %v816
      %v1102 = vsel %vm1084, %v1069, %v818
      %v1104 = vsel %vm1084, %v1071, %v820
      %v1106 = vsel %vm1084, %v1073, %v822
      %v1108 = vsel %vm1084, %v1075, %v824
      %v1110 = vsel %vm1084, %v1077, %v826
      %v1112 = vsel %vm1084, %v1079, %v828
      %v1114 = vsel %vm1084, %v1081, %v830
      %v1116 = vsel %vm1084, %v1083, %v832
      %vm1117 = vcmask 195584
      %v1119 = vsel %vm1117, %v1086, %v839
      %v1121 = vsel %vm1117, %v1088, %v841
      %v1123 = vsel %vm1117, %v1090, %v843
      %v1125 = vsel %vm1117, %v1092, %v845
      %v1127 = vsel %vm1117, %v1094, %v847
      %v1129 = vsel %vm1117, %v1096, %v849
      %v1131 = vsel %vm1117, %v1098, %v851
      %v1133 = vsel %vm1117, %v1100, %v853
      %v1135 = vsel %vm1117, %v1102, %v855
      %v1137 = vsel %vm1117, %v1104, %v857
      %v1139 = vsel %vm1117, %v1106, %v859
      %v1141 = vsel %vm1117, %v1108, %v861
      %v1143 = vsel %vm1117, %v1110, %v863
      %v1145 = vsel %vm1117, %v1112, %v865
      %v1147 = vsel %vm1117, %v1114, %v867
      %v1149 = vsel %vm1117, %v1116, %v869
      %vm1150 = vcmask 228352
      %v1152 = vsel %vm1150, %v1119, %v886
      %v1154 = vsel %vm1150, %v1121, %v888
      %v1156 = vsel %vm1150, %v1123, %v890
      %v1158 = vsel %vm1150, %v1125, %v892
      %v1160 = vsel %vm1150, %v1127, %v894
      %v1162 = vsel %vm1150, %v1129, %v896
      %v1164 = vsel %vm1150, %v1131, %v898
      %v1166 = vsel %vm1150, %v1133, %v900
      %v1168 = vsel %vm1150, %v1135, %v902
      %v1170 = vsel %vm1150, %v1137, %v904
      %v1172 = vsel %vm1150, %v1139, %v906
      %v1174 = vsel %vm1150, %v1141, %v908
      %v1176 = vsel %vm1150, %v1143, %v910
      %v1178 = vsel %vm1150, %v1145, %v912
      %v1180 = vsel %vm1150, %v1147, %v914
      %v1182 = vsel %vm1150, %v1149, %v916
      %vm1183 = vcmask 261120
      %v1185 = vsel %vm1183, %v1152, %v921
      %v1187 = vsel %vm1183, %v1154, %v923
      %v1189 = vsel %vm1183, %v1156, %v925
      %v1191 = vsel %vm1183, %v1158, %v927
      %v1193 = vsel %vm1183, %v1160, %v929
      %v1195 = vsel %vm1183, %v1162, %v931
      %v1197 = vsel %vm1183, %v1164, %v933
      %v1199 = vsel %vm1183, %v1166, %v935
      %v1201 = vsel %vm1183, %v1168, %v937
      %v1203 = vsel %vm1183, %v1170, %v939
      %v1205 = vsel %vm1183, %v1172, %v941
      %v1207 = vsel %vm1183, %v1174, %v943
      %v1209 = vsel %vm1183, %v1176, %v945
      %v1211 = vsel %vm1183, %v1178, %v947
      %v1213 = vsel %vm1183, %v1180, %v949
      %v1215 = vsel %vm1183, %v1182, %v951
      %v1216 = vld [vmem:[%s1] sm:$0xf]
      %v1217 = vld [vmem:[%s1 + $0x4] sm:$0xf]
      %v1218 = vld [vmem:[%s1 + $0x8] sm:$0xf]
      %v1219 = vld [vmem:[%s1 + $0xc] sm:$0xf]
      %v1220 = vld [vmem:[%s1 + $0x10] sm:$0x3]
      %v1221 = vld [vmem:[%s3] sm:$0x1]
      %v1223 = vlaneseq
      %v1224 = vshrl.u32 %v1223, 7
      %v1225 = vsub.s32 0, %v1224
      %v1226 = vrot.slane %v1221, %v1225
      %v1233 = vunpack.c.l.b16 %v1216
      %v1234 = vunpack.c.l.b16 %v1217
      %v1235 = vunpack.c.l.b16 %v1218
      %v1236 = vunpack.c.l.b16 %v1219
      %v1237 = vunpack.c.l.b16 %v1220
      %v1238 = vpack.c.b16 %v1234, %v1233
      %v1239 = vpack.c.b16 %v1236, %v1235
      %v1240 = vpack.c.b16 %v1237, %v1237
      %vm1243 = vcmask 293888
      %v1244 = vsel %vm1243, %v1185, 0
      %v1246 = vsel %vm1243, %v1187, 0
      %v1248 = vsel %vm1243, %v1189, 0
      %v1250 = vsel %vm1243, %v1191, 0
      %v1252 = vsel %vm1243, %v1193, 0
      %v1254 = vsel %vm1243, %v1195, 0
      %v1256 = vsel %vm1243, %v1197, 0
      %v1258 = vsel %vm1243, %v1199, 0
      %v1260 = vsel %vm1243, %v1201, 0
      %v1262 = vsel %vm1243, %v1203, 0
      %v1264 = vsel %vm1243, %v1205, 0
      %v1266 = vsel %vm1243, %v1207, 0
      %v1268 = vsel %vm1243, %v1209, 0
      %v1270 = vsel %vm1243, %v1211, 0
      %v1272 = vsel %vm1243, %v1213, 0
      %v1274 = vsel %vm1243, %v1215, 0
      %vm1276 = vcmask 1041408
      %v1278 = vsel %vm1276, %v1240, 0
      %1280 = vmatprep.subr.bf16.mxu0 0
      %1281 = vmatpush1.bf16.msra.mxu0 0
      %1282 = vmatprep.subr.bf16.mxu0 0
      %1283 = vmatpush1.bf16.msra.mxu0 0
      %1284 = vmatprep.subr.bf16.mxu0 0
      %1285 = vmatpush1.bf16.msra.mxu0 0
      %1286 = vmatprep.subr.bf16.mxu0 0
      %1287 = vmatpush1.bf16.msra.mxu0 0
      %1288 = vmatprep.subr.bf16.mxu0 0
      %1289 = vmatpush1.bf16.msra.mxu0 0
      %1290 = vmatprep.subr.bf16.mxu0 0
      %1291 = vmatpush1.bf16.msra.mxu0 %v1278
      %1292 = vmatprep.subr.bf16.mxu0 0
      %1293 = vmatpush1.bf16.msra.mxu0 %v1239
      %1294 = vmatprep.subr.bf16.mxu0 0
      %1295 = vmatpush1.bf16.msra.mxu0 %v1238
      %1296 = vmatprep.subr.bf16.mxu0 0
      %1297 = vmatpush2.bf16.msra.mxu0 0
      %1298 = vmatprep.subr.bf16.mxu0 0
      %1299 = vmatpush2.bf16.msra.mxu0 0
      %1300 = vmatprep.subr.bf16.mxu0 0
      %1301 = vmatpush2.bf16.msra.mxu0 0
      %1302 = vmatprep.subr.bf16.mxu0 0
      %1303 = vmatpush2.bf16.msra.mxu0 0
      %1304 = vmatprep.subr.bf16.mxu0 0
      %1305 = vmatpush2.bf16.msra.mxu0 0
      %1306 = vmatprep.subr.bf16.mxu0 0
      %1307 = vmatpush2.bf16.msra.mxu0 0
      %1308 = vmatprep.subr.bf16.mxu0 0
      %1309 = vmatpush2.bf16.msra.mxu0 0
      %1310 = vmatprep.subr.bf16.mxu0 0
      %1311 = vmatpush2.bf16.msra.mxu0 0
      %1312 = vmatprep.mubr.bf16.mxu0 0
      %1313 = vmatmul.mubr.bf16.gmra.mxu0 %v1244
      %v1314 = vpop.f32.mrf.mxu0
      %v1315 = vadd.f32 %v1226, %v1314
      %v1316 = vpop.f32.mrf.mxu0
      %v1317 = vpop.f32.mrf.mxu0
      %v1318 = vadd.f32 %v1226, %v1317
      %v1319 = vpop.f32.mrf.mxu0
      %1320 = vmatprep.mubr.bf16.mxu0 0
      %1321 = vmatmul.mubr.bf16.gmra.mxu0 %v1246
      %v1322 = vpop.f32.mrf.mxu0
      %v1323 = vadd.f32 %v1226, %v1322
      %v1324 = vpop.f32.mrf.mxu0
      %v1325 = vpop.f32.mrf.mxu0
      %v1326 = vadd.f32 %v1226, %v1325
      %v1327 = vpop.f32.mrf.mxu0
      %1328 = vmatprep.mubr.bf16.mxu0 0
      %1329 = vmatmul.mubr.bf16.gmra.mxu0 %v1248
      %v1330 = vpop.f32.mrf.mxu0
      %v1331 = vadd.f32 %v1226, %v1330
      %v1332 = vpop.f32.mrf.mxu0
      %v1333 = vpop.f32.mrf.mxu0
      %v1334 = vadd.f32 %v1226, %v1333
      %v1335 = vpop.f32.mrf.mxu0
      %1336 = vmatprep.mubr.bf16.mxu0 0
      %1337 = vmatmul.mubr.bf16.gmra.mxu0 %v1250
      %v1338 = vpop.f32.mrf.mxu0
      %v1339 = vadd.f32 %v1226, %v1338
      %v1340 = vpop.f32.mrf.mxu0
      %v1341 = vpop.f32.mrf.mxu0
      %v1342 = vadd.f32 %v1226, %v1341
      %v1343 = vpop.f32.mrf.mxu0
      %1344 = vmatprep.mubr.bf16.mxu0 0
      %1345 = vmatmul.mubr.bf16.gmra.mxu0 %v1252
      %v1346 = vpop.f32.mrf.mxu0
      %v1347 = vadd.f32 %v1226, %v1346
      %v1348 = vpop.f32.mrf.mxu0
      %v1349 = vpop.f32.mrf.mxu0
      %v1350 = vadd.f32 %v1226, %v1349
      %v1351 = vpop.f32.mrf.mxu0
      %1352 = vmatprep.mubr.bf16.mxu0 0
      %1353 = vmatmul.mubr.bf16.gmra.mxu0 %v1254
      %v1354 = vpop.f32.mrf.mxu0
      %v1355 = vadd.f32 %v1226, %v1354
      %v1356 = vpop.f32.mrf.mxu0
      %v1357 = vpop.f32.mrf.mxu0
      %v1358 = vadd.f32 %v1226, %v1357
      %v1359 = vpop.f32.mrf.mxu0
      %1360 = vmatprep.mubr.bf16.mxu0 0
      %1361 = vmatmul.mubr.bf16.gmra.mxu0 %v1256
      %v1362 = vpop.f32.mrf.mxu0
      %v1363 = vadd.f32 %v1226, %v1362
      %v1364 = vpop.f32.mrf.mxu0
      %v1365 = vpop.f32.mrf.mxu0
      %v1366 = vadd.f32 %v1226, %v1365
      %v1367 = vpop.f32.mrf.mxu0
      %1368 = vmatprep.mubr.bf16.mxu0 0
      %1369 = vmatmul.mubr.bf16.gmra.mxu0 %v1258
      %v1370 = vpop.f32.mrf.mxu0
      %v1371 = vadd.f32 %v1226, %v1370
      %v1372 = vpop.f32.mrf.mxu0
      %v1373 = vpop.f32.mrf.mxu0
      %v1374 = vadd.f32 %v1226, %v1373
      %v1375 = vpop.f32.mrf.mxu0
      %1376 = vmatprep.mubr.bf16.mxu0 0
      %1377 = vmatmul.mubr.bf16.gmra.mxu0 %v1260
      %v1378 = vpop.f32.mrf.mxu0
      %v1379 = vadd.f32 %v1226, %v1378
      %v1380 = vpop.f32.mrf.mxu0
      %v1381 = vpop.f32.mrf.mxu0
      %v1382 = vadd.f32 %v1226, %v1381
      %v1383 = vpop.f32.mrf.mxu0
      %1384 = vmatprep.mubr.bf16.mxu0 0
      %1385 = vmatmul.mubr.bf16.gmra.mxu0 %v1262
      %v1386 = vpop.f32.mrf.mxu0
      %v1387 = vadd.f32 %v1226, %v1386
      %v1388 = vpop.f32.mrf.mxu0
      %v1389 = vpop.f32.mrf.mxu0
      %v1390 = vadd.f32 %v1226, %v1389
      %v1391 = vpop.f32.mrf.mxu0
      %1392 = vmatprep.mubr.bf16.mxu0 0
      %1393 = vmatmul.mubr.bf16.gmra.mxu0 %v1264
      %v1394 = vpop.f32.mrf.mxu0
      %v1395 = vadd.f32 %v1226, %v1394
      %v1396 = vpop.f32.mrf.mxu0
      %v1397 = vpop.f32.mrf.mxu0
      %v1398 = vadd.f32 %v1226, %v1397
      %v1399 = vpop.f32.mrf.mxu0
      %1400 = vmatprep.mubr.bf16.mxu0 0
      %1401 = vmatmul.mubr.bf16.gmra.mxu0 %v1266
      %v1402 = vpop.f32.mrf.mxu0
      %v1403 = vadd.f32 %v1226, %v1402
      %v1404 = vpop.f32.mrf.mxu0
      %v1405 = vpop.f32.mrf.mxu0
      %v1406 = vadd.f32 %v1226, %v1405
      %v1407 = vpop.f32.mrf.mxu0
      %1408 = vmatprep.mubr.bf16.mxu0 0
      %1409 = vmatmul.mubr.bf16.gmra.mxu0 %v1268
      %v1410 = vpop.f32.mrf.mxu0
      %v1411 = vadd.f32 %v1226, %v1410
      %v1412 = vpop.f32.mrf.mxu0
      %v1413 = vpop.f32.mrf.mxu0
      %v1414 = vadd.f32 %v1226, %v1413
      %v1415 = vpop.f32.mrf.mxu0
      %1416 = vmatprep.mubr.bf16.mxu0 0
      %1417 = vmatmul.mubr.bf16.gmra.mxu0 %v1270
      %v1418 = vpop.f32.mrf.mxu0
      %v1419 = vadd.f32 %v1226, %v1418
      %v1420 = vpop.f32.mrf.mxu0
      %v1421 = vpop.f32.mrf.mxu0
      %v1422 = vadd.f32 %v1226, %v1421
      %v1423 = vpop.f32.mrf.mxu0
      %1424 = vmatprep.mubr.bf16.mxu0 0
      %1425 = vmatmul.mubr.bf16.gmra.mxu0 %v1272
      %v1426 = vpop.f32.mrf.mxu0
      %v1427 = vadd.f32 %v1226, %v1426
      %v1428 = vpop.f32.mrf.mxu0
      %v1429 = vpop.f32.mrf.mxu0
      %v1430 = vadd.f32 %v1226, %v1429
      %v1431 = vpop.f32.mrf.mxu0
      %1432 = vmatprep.mubr.bf16.mxu0 0
      %1433 = vmatmul.mubr.bf16.gmra.mxu0 %v1274
      %v1434 = vpop.f32.mrf.mxu0
      %v1435 = vadd.f32 %v1226, %v1434
      %v1436 = vpop.f32.mrf.mxu0
      %v1437 = vpop.f32.mrf.mxu0
      %v1438 = vadd.f32 %v1226, %v1437
      %v1439 = vpop.f32.mrf.mxu0
      %1440 = vdwg.mxu0
      %v1441 = vmax.f32 %v1315, 0.0
      %v1442 = vmax.f32 %v1318, 0.0
      %v1443 = vmax.f32 %v1323, 0.0
      %v1444 = vmax.f32 %v1326, 0.0
      %v1445 = vmax.f32 %v1331, 0.0
      %v1446 = vmax.f32 %v1334, 0.0
      %v1447 = vmax.f32 %v1339, 0.0
      %v1448 = vmax.f32 %v1342, 0.0
      %v1449 = vmax.f32 %v1347, 0.0
      %v1450 = vmax.f32 %v1350, 0.0
      %v1451 = vmax.f32 %v1355, 0.0
      %v1452 = vmax.f32 %v1358, 0.0
      %v1453 = vmax.f32 %v1363, 0.0
      %v1454 = vmax.f32 %v1366, 0.0
      %v1455 = vmax.f32 %v1371, 0.0
      %v1456 = vmax.f32 %v1374, 0.0
      %v1457 = vmax.f32 %v1379, 0.0
      %v1458 = vmax.f32 %v1382, 0.0
      %v1459 = vmax.f32 %v1387, 0.0
      %v1460 = vmax.f32 %v1390, 0.0
      %v1461 = vmax.f32 %v1395, 0.0
      %v1462 = vmax.f32 %v1398, 0.0
      %v1463 = vmax.f32 %v1403, 0.0
      %v1464 = vmax.f32 %v1406, 0.0
      %v1465 = vmax.f32 %v1411, 0.0
      %v1466 = vmax.f32 %v1414, 0.0
      %v1467 = vmax.f32 %v1419, 0.0
      %v1468 = vmax.f32 %v1422, 0.0
      %v1469 = vmax.f32 %v1427, 0.0
      %v1470 = vmax.f32 %v1430, 0.0
      %v1471 = vmax.f32 %v1435, 0.0
      %v1472 = vmax.f32 %v1438, 0.0
      %v1473 = vpack.c.bf16 %v1442, %v1441
      %v1474 = vpack.c.bf16 %v1444, %v1443
      %v1475 = vpack.c.bf16 %v1446, %v1445
      %v1476 = vpack.c.bf16 %v1448, %v1447
      %v1477 = vpack.c.bf16 %v1450, %v1449
      %v1478 = vpack.c.bf16 %v1452, %v1451
      %v1479 = vpack.c.bf16 %v1454, %v1453
      %v1480 = vpack.c.bf16 %v1456, %v1455
      %v1481 = vpack.c.bf16 %v1458, %v1457
      %v1482 = vpack.c.bf16 %v1460, %v1459
      %v1483 = vpack.c.bf16 %v1462, %v1461
      %v1484 = vpack.c.bf16 %v1464, %v1463
      %v1485 = vpack.c.bf16 %v1466, %v1465
      %v1486 = vpack.c.bf16 %v1468, %v1467
      %v1487 = vpack.c.bf16 %v1470, %v1469
      %v1488 = vpack.c.bf16 %v1472, %v1471
      %v1490 = vshrl.u32 0, 16
      %v1492 = vrot.slane %v1490, 7
      %v1493 = vshll.u32 0, 16
      %v1495 = vor.u32 %v1492, %v1493
      %v1497 = vshrl.u32 %v1473, 16
      %v1499 = vrot.slane %v1497, 7
      %v1500 = vshll.u32 %v1473, 16
      %v1502 = vor.u32 %v1499, %v1500
      %v1504 = vshrl.u32 %v1474, 16
      %v1506 = vrot.slane %v1504, 7
      %v1507 = vshll.u32 %v1474, 16
      %v1509 = vor.u32 %v1506, %v1507
      %v1511 = vshrl.u32 %v1475, 16
      %v1513 = vrot.slane %v1511, 7
      %v1514 = vshll.u32 %v1475, 16
      %v1516 = vor.u32 %v1513, %v1514
      %v1518 = vshrl.u32 %v1476, 16
      %v1520 = vrot.slane %v1518, 7
      %v1521 = vshll.u32 %v1476, 16
      %v1523 = vor.u32 %v1520, %v1521
      %v1525 = vshrl.u32 %v1477, 16
      %v1527 = vrot.slane %v1525, 7
      %v1528 = vshll.u32 %v1477, 16
      %v1530 = vor.u32 %v1527, %v1528
      %v1532 = vshrl.u32 %v1478, 16
      %v1534 = vrot.slane %v1532, 7
      %v1535 = vshll.u32 %v1478, 16
      %v1537 = vor.u32 %v1534, %v1535
      %v1539 = vshrl.u32 %v1479, 16
      %v1541 = vrot.slane %v1539, 7
      %v1542 = vshll.u32 %v1479, 16
      %v1544 = vor.u32 %v1541, %v1542
      %v1546 = vshrl.u32 %v1480, 16
      %v1548 = vrot.slane %v1546, 7
      %v1549 = vshll.u32 %v1480, 16
      %v1551 = vor.u32 %v1548, %v1549
      %v1553 = vshrl.u32 %v1481, 16
      %v1555 = vrot.slane %v1553, 7
      %v1556 = vshll.u32 %v1481, 16
      %v1558 = vor.u32 %v1555, %v1556
      %v1560 = vshrl.u32 %v1482, 16
      %v1562 = vrot.slane %v1560, 7
      %v1563 = vshll.u32 %v1482, 16
      %v1565 = vor.u32 %v1562, %v1563
      %v1567 = vshrl.u32 %v1483, 16
      %v1569 = vrot.slane %v1567, 7
      %v1570 = vshll.u32 %v1483, 16
      %v1572 = vor.u32 %v1569, %v1570
      %v1574 = vshrl.u32 %v1484, 16
      %v1576 = vrot.slane %v1574, 7
      %v1577 = vshll.u32 %v1484, 16
      %v1579 = vor.u32 %v1576, %v1577
      %v1581 = vshrl.u32 %v1485, 16
      %v1583 = vrot.slane %v1581, 7
      %v1584 = vshll.u32 %v1485, 16
      %v1586 = vor.u32 %v1583, %v1584
      %v1588 = vshrl.u32 %v1486, 16
      %v1590 = vrot.slane %v1588, 7
      %v1591 = vshll.u32 %v1486, 16
      %v1593 = vor.u32 %v1590, %v1591
      %v1595 = vshrl.u32 %v1487, 16
      %v1597 = vrot.slane %v1595, 7
      %v1598 = vshll.u32 %v1487, 16
      %v1600 = vor.u32 %v1597, %v1598
      %v1602 = vshrl.u32 %v1488, 16
      %v1604 = vrot.slane %v1602, 7
      %v1605 = vshll.u32 %v1488, 16
      %v1607 = vor.u32 %v1604, %v1605
      %vm1642 = vcmask 1040384
      %vm1643 = vsmask.f32 256
      %vm1644 = vmand %vm1642, %vm1643
      %v1645 = vsel %vm1644, 0, %v1495
      %v1646 = vsel %vm1644, 0, %v1502
      %v1647 = vsel %vm1644, 0, %v1509
      %v1648 = vsel %vm1644, 0, %v1516
      %v1649 = vsel %vm1644, 0, %v1523
      %v1650 = vsel %vm1644, 0, %v1530
      %v1651 = vsel %vm1644, 0, %v1537
      %v1652 = vsel %vm1644, 0, %v1544
      %v1653 = vsel %vm1644, 0, %v1551
      %v1654 = vsel %vm1644, 0, %v1558
      %v1655 = vsel %vm1644, 0, %v1565
      %v1656 = vsel %vm1644, 0, %v1572
      %v1657 = vsel %vm1644, 0, %v1579
      %v1658 = vsel %vm1644, 0, %v1586
      %v1659 = vsel %vm1644, 0, %v1593
      %v1660 = vsel %vm1644, 0, %v1600
      %v1661 = vsel %vm1644, 0, %v1607
      %v1662 = vsel %vm1644, %v1492, 0
      %v1663 = vsel %vm1644, %v1499, 0
      %v1664 = vsel %vm1644, %v1506, 0
      %v1665 = vsel %vm1644, %v1513, 0
      %v1666 = vsel %vm1644, %v1520, 0
      %v1667 = vsel %vm1644, %v1527, 0
      %v1668 = vsel %vm1644, %v1534, 0
      %v1669 = vsel %vm1644, %v1541, 0
      %v1670 = vsel %vm1644, %v1548, 0
      %v1671 = vsel %vm1644, %v1555, 0
      %v1672 = vsel %vm1644, %v1562, 0
      %v1673 = vsel %vm1644, %v1569, 0
      %v1674 = vsel %vm1644, %v1576, 0
      %v1675 = vsel %vm1644, %v1583, 0
      %v1676 = vsel %vm1644, %v1590, 0
      %v1677 = vsel %vm1644, %v1597, 0
      %v1678 = vsel %vm1644, %v1604, 0
      %v1680 = vshrl.u32 %v1645, 16
      %v1682 = vshll.u32 %v1645, 16
      %v1684 = vrot.slane %v1682, 1
      %v1685 = vor.u32 %v1680, %v1684
      %v1687 = vshll.u32 %v1662, 16
      %v1689 = vrot.slane %v1687, 1
      %v1690 = vsel %vm408, %v1685, %v1689
      %v1692 = vshrl.u32 %v1646, 16
      %v1694 = vshll.u32 %v1646, 16
      %v1696 = vrot.slane %v1694, 1
      %v1697 = vor.u32 %v1692, %v1696
      %v1699 = vshll.u32 %v1663, 16
      %v1701 = vrot.slane %v1699, 1
      %v1702 = vsel %vm408, %v1697, %v1701
      %v1704 = vshrl.u32 %v1647, 16
      %v1706 = vshll.u32 %v1647, 16
      %v1708 = vrot.slane %v1706, 1
      %v1709 = vor.u32 %v1704, %v1708
      %v1711 = vshll.u32 %v1664, 16
      %v1713 = vrot.slane %v1711, 1
      %v1714 = vsel %vm408, %v1709, %v1713
      %v1716 = vshrl.u32 %v1648, 16
      %v1718 = vshll.u32 %v1648, 16
      %v1720 = vrot.slane %v1718, 1
      %v1721 = vor.u32 %v1716, %v1720
      %v1723 = vshll.u32 %v1665, 16
      %v1725 = vrot.slane %v1723, 1
      %v1726 = vsel %vm408, %v1721, %v1725
      %v1728 = vshrl.u32 %v1649, 16
      %v1730 = vshll.u32 %v1649, 16
      %v1732 = vrot.slane %v1730, 1
      %v1733 = vor.u32 %v1728, %v1732
      %v1735 = vshll.u32 %v1666, 16
      %v1737 = vrot.slane %v1735, 1
      %v1738 = vsel %vm408, %v1733, %v1737
      %v1740 = vshrl.u32 %v1650, 16
      %v1742 = vshll.u32 %v1650, 16
      %v1744 = vrot.slane %v1742, 1
      %v1745 = vor.u32 %v1740, %v1744
      %v1747 = vshll.u32 %v1667, 16
      %v1749 = vrot.slane %v1747, 1
      %v1750 = vsel %vm408, %v1745, %v1749
      %v1752 = vshrl.u32 %v1651, 16
      %v1754 = vshll.u32 %v1651, 16
      %v1756 = vrot.slane %v1754, 1
      %v1757 = vor.u32 %v1752, %v1756
      %v1759 = vshll.u32 %v1668, 16
      %v1761 = vrot.slane %v1759, 1
      %v1762 = vsel %vm408, %v1757, %v1761
      %v1764 = vshrl.u32 %v1652, 16
      %v1766 = vshll.u32 %v1652, 16
      %v1768 = vrot.slane %v1766, 1
      %v1769 = vor.u32 %v1764, %v1768
      %v1771 = vshll.u32 %v1669, 16
      %v1773 = vrot.slane %v1771, 1
      %v1774 = vsel %vm408, %v1769, %v1773
      %v1776 = vshrl.u32 %v1653, 16
      %v1778 = vshll.u32 %v1653, 16
      %v1780 = vrot.slane %v1778, 1
      %v1781 = vor.u32 %v1776, %v1780
      %v1783 = vshll.u32 %v1670, 16
      %v1785 = vrot.slane %v1783, 1
      %v1786 = vsel %vm408, %v1781, %v1785
      %v1788 = vshrl.u32 %v1654, 16
      %v1790 = vshll.u32 %v1654, 16
      %v1792 = vrot.slane %v1790, 1
      %v1793 = vor.u32 %v1788, %v1792
      %v1795 = vshll.u32 %v1671, 16
      %v1797 = vrot.slane %v1795, 1
      %v1798 = vsel %vm408, %v1793, %v1797
      %v1800 = vshrl.u32 %v1655, 16
      %v1802 = vshll.u32 %v1655, 16
      %v1804 = vrot.slane %v1802, 1
      %v1805 = vor.u32 %v1800, %v1804
      %v1807 = vshll.u32 %v1672, 16
      %v1809 = vrot.slane %v1807, 1
      %v1810 = vsel %vm408, %v1805, %v1809
      %v1812 = vshrl.u32 %v1656, 16
      %v1814 = vshll.u32 %v1656, 16
      %v1816 = vrot.slane %v1814, 1
      %v1817 = vor.u32 %v1812, %v1816
      %v1819 = vshll.u32 %v1673, 16
      %v1821 = vrot.slane %v1819, 1
      %v1822 = vsel %vm408, %v1817, %v1821
      %v1824 = vshrl.u32 %v1657, 16
      %v1826 = vshll.u32 %v1657, 16
      %v1828 = vrot.slane %v1826, 1
      %v1829 = vor.u32 %v1824, %v1828
      %v1831 = vshll.u32 %v1674, 16
      %v1833 = vrot.slane %v1831, 1
      %v1834 = vsel %vm408, %v1829, %v1833
      %v1836 = vshrl.u32 %v1658, 16
      %v1838 = vshll.u32 %v1658, 16
      %v1840 = vrot.slane %v1838, 1
      %v1841 = vor.u32 %v1836, %v1840
      %v1843 = vshll.u32 %v1675, 16
      %v1845 = vrot.slane %v1843, 1
      %v1846 = vsel %vm408, %v1841, %v1845
      %v1848 = vshrl.u32 %v1659, 16
      %v1850 = vshll.u32 %v1659, 16
      %v1852 = vrot.slane %v1850, 1
      %v1853 = vor.u32 %v1848, %v1852
      %v1855 = vshll.u32 %v1676, 16
      %v1857 = vrot.slane %v1855, 1
      %v1858 = vsel %vm408, %v1853, %v1857
      %v1860 = vshrl.u32 %v1660, 16
      %v1862 = vshll.u32 %v1660, 16
      %v1864 = vrot.slane %v1862, 1
      %v1865 = vor.u32 %v1860, %v1864
      %v1867 = vshll.u32 %v1677, 16
      %v1869 = vrot.slane %v1867, 1
      %v1870 = vsel %vm408, %v1865, %v1869
      %1871 = vrot.lane.b32.xlu0 %v1690, 8
      %v1872 = vpop.permute.xlu0 %1871
      %1873 = vrot.lane.b32.xlu0 %v1702, 8
      %v1874 = vpop.permute.xlu0 %1873
      %1875 = vrot.lane.b32.xlu0 %v1714, 8
      %v1876 = vpop.permute.xlu0 %1875
      %1877 = vrot.lane.b32.xlu0 %v1726, 8
      %v1878 = vpop.permute.xlu0 %1877
      %1879 = vrot.lane.b32.xlu0 %v1738, 8
      %v1880 = vpop.permute.xlu0 %1879
      %1881 = vrot.lane.b32.xlu0 %v1750, 8
      %v1882 = vpop.permute.xlu0 %1881
      %1883 = vrot.lane.b32.xlu0 %v1762, 8
      %v1884 = vpop.permute.xlu0 %1883
      %1885 = vrot.lane.b32.xlu0 %v1774, 8
      %v1886 = vpop.permute.xlu0 %1885
      %1887 = vrot.lane.b32.xlu0 %v1786, 8
      %v1888 = vpop.permute.xlu0 %1887
      %1889 = vrot.lane.b32.xlu0 %v1798, 8
      %v1890 = vpop.permute.xlu0 %1889
      %1891 = vrot.lane.b32.xlu0 %v1810, 8
      %v1892 = vpop.permute.xlu0 %1891
      %1893 = vrot.lane.b32.xlu0 %v1822, 8
      %v1894 = vpop.permute.xlu0 %1893
      %1895 = vrot.lane.b32.xlu0 %v1834, 8
      %v1896 = vpop.permute.xlu0 %1895
      %1897 = vrot.lane.b32.xlu0 %v1846, 8
      %v1898 = vpop.permute.xlu0 %1897
      %1899 = vrot.lane.b32.xlu0 %v1858, 8
      %v1900 = vpop.permute.xlu0 %1899
      %1901 = vrot.lane.b32.xlu0 %v1870, 8
      %v1902 = vpop.permute.xlu0 %1901
      %v1935 = vrot.slane %v1645, 1
      %v1936 = vrot.slane %v1662, 1
      %v1937 = vsel %vm633, %v1935, %v1936
      %v1938 = vrot.slane %v1646, 1
      %v1939 = vrot.slane %v1663, 1
      %v1940 = vsel %vm633, %v1938, %v1939
      %v1941 = vrot.slane %v1647, 1
      %v1942 = vrot.slane %v1664, 1
      %v1943 = vsel %vm633, %v1941, %v1942
      %v1944 = vrot.slane %v1648, 1
      %v1945 = vrot.slane %v1665, 1
      %v1946 = vsel %vm633, %v1944, %v1945
      %v1947 = vrot.slane %v1649, 1
      %v1948 = vrot.slane %v1666, 1
      %v1949 = vsel %vm633, %v1947, %v1948
      %v1950 = vrot.slane %v1650, 1
      %v1951 = vrot.slane %v1667, 1
      %v1952 = vsel %vm633, %v1950, %v1951
      %v1953 = vrot.slane %v1651, 1
      %v1954 = vrot.slane %v1668, 1
      %v1955 = vsel %vm633, %v1953, %v1954
      %v1956 = vrot.slane %v1652, 1
      %v1957 = vrot.slane %v1669, 1
      %v1958 = vsel %vm633, %v1956, %v1957
      %v1959 = vrot.slane %v1653, 1
      %v1960 = vrot.slane %v1670, 1
      %v1961 = vsel %vm633, %v1959, %v1960
      %v1962 = vrot.slane %v1654, 1
      %v1963 = vrot.slane %v1671, 1
      %v1964 = vsel %vm633, %v1962, %v1963
      %v1965 = vrot.slane %v1655, 1
      %v1966 = vrot.slane %v1672, 1
      %v1967 = vsel %vm633, %v1965, %v1966
      %v1968 = vrot.slane %v1656, 1
      %v1969 = vrot.slane %v1673, 1
      %v1970 = vsel %vm633, %v1968, %v1969
      %v1971 = vrot.slane %v1657, 1
      %v1972 = vrot.slane %v1674, 1
      %v1973 = vsel %vm633, %v1971, %v1972
      %v1974 = vrot.slane %v1658, 1
      %v1975 = vrot.slane %v1675, 1
      %v1976 = vsel %vm633, %v1974, %v1975
      %v1977 = vrot.slane %v1659, 1
      %v1978 = vrot.slane %v1676, 1
      %v1979 = vsel %vm633, %v1977, %v1978
      %v1980 = vrot.slane %v1660, 1
      %v1981 = vrot.slane %v1677, 1
      %v1982 = vsel %vm633, %v1980, %v1981
      %1983 = vrot.lane.b32.xlu0 %v1937, 16
      %v1984 = vpop.permute.xlu0 %1983
      %1985 = vrot.lane.b32.xlu0 %v1940, 16
      %v1986 = vpop.permute.xlu0 %1985
      %1987 = vrot.lane.b32.xlu0 %v1943, 16
      %v1988 = vpop.permute.xlu0 %1987
      %1989 = vrot.lane.b32.xlu0 %v1946, 16
      %v1990 = vpop.permute.xlu0 %1989
      %1991 = vrot.lane.b32.xlu0 %v1949, 16
      %v1992 = vpop.permute.xlu0 %1991
      %1993 = vrot.lane.b32.xlu0 %v1952, 16
      %v1994 = vpop.permute.xlu0 %1993
      %1995 = vrot.lane.b32.xlu0 %v1955, 16
      %v1996 = vpop.permute.xlu0 %1995
      %1997 = vrot.lane.b32.xlu0 %v1958, 16
      %v1998 = vpop.permute.xlu0 %1997
      %1999 = vrot.lane.b32.xlu0 %v1961, 16
      %v2000 = vpop.permute.xlu0 %1999
      %2001 = vrot.lane.b32.xlu0 %v1964, 16
      %v2002 = vpop.permute.xlu0 %2001
      %2003 = vrot.lane.b32.xlu0 %v1967, 16
      %v2004 = vpop.permute.xlu0 %2003
      %2005 = vrot.lane.b32.xlu0 %v1970, 16
      %v2006 = vpop.permute.xlu0 %2005
      %2007 = vrot.lane.b32.xlu0 %v1973, 16
      %v2008 = vpop.permute.xlu0 %2007
      %2009 = vrot.lane.b32.xlu0 %v1976, 16
      %v2010 = vpop.permute.xlu0 %2009
      %2011 = vrot.lane.b32.xlu0 %v1979, 16
      %v2012 = vpop.permute.xlu0 %2011
      %2013 = vrot.lane.b32.xlu0 %v1982, 16
      %v2014 = vpop.permute.xlu0 %2013
      %2016 = vrot.lane.b32.xlu0 %v1646, 24
      %v2017 = vpop.permute.xlu0 %2016
      %2018 = vrot.lane.b32.xlu0 %v1647, 24
      %v2019 = vpop.permute.xlu0 %2018
      %2020 = vrot.lane.b32.xlu0 %v1648, 24
      %v2021 = vpop.permute.xlu0 %2020
      %2022 = vrot.lane.b32.xlu0 %v1649, 24
      %v2023 = vpop.permute.xlu0 %2022
      %2024 = vrot.lane.b32.xlu0 %v1650, 24
      %v2025 = vpop.permute.xlu0 %2024
      %2026 = vrot.lane.b32.xlu0 %v1651, 24
      %v2027 = vpop.permute.xlu0 %2026
      %2028 = vrot.lane.b32.xlu0 %v1652, 24
      %v2029 = vpop.permute.xlu0 %2028
      %2030 = vrot.lane.b32.xlu0 %v1653, 24
      %v2031 = vpop.permute.xlu0 %2030
      %2032 = vrot.lane.b32.xlu0 %v1654, 24
      %v2033 = vpop.permute.xlu0 %2032
      %2034 = vrot.lane.b32.xlu0 %v1655, 24
      %v2035 = vpop.permute.xlu0 %2034
      %2036 = vrot.lane.b32.xlu0 %v1656, 24
      %v2037 = vpop.permute.xlu0 %2036
      %2038 = vrot.lane.b32.xlu0 %v1657, 24
      %v2039 = vpop.permute.xlu0 %2038
      %2040 = vrot.lane.b32.xlu0 %v1658, 24
      %v2041 = vpop.permute.xlu0 %2040
      %2042 = vrot.lane.b32.xlu0 %v1659, 24
      %v2043 = vpop.permute.xlu0 %2042
      %2044 = vrot.lane.b32.xlu0 %v1660, 24
      %v2045 = vpop.permute.xlu0 %2044
      %2046 = vrot.lane.b32.xlu0 %v1661, 24
      %v2047 = vpop.permute.xlu0 %2046
      %v2049 = vshrl.u32 %v1661, 16
      %v2051 = vshll.u32 %v1661, 16
      %v2053 = vrot.slane %v2051, 1
      %v2054 = vor.u32 %v2049, %v2053
      %v2056 = vshll.u32 %v1678, 16
      %v2058 = vrot.slane %v2056, 1
      %v2059 = vsel %vm408, %v2054, %v2058
      %2060 = vrot.lane.b32.xlu0 %v1702, 32
      %v2061 = vpop.permute.xlu0 %2060
      %2062 = vrot.lane.b32.xlu0 %v1714, 32
      %v2063 = vpop.permute.xlu0 %2062
      %2064 = vrot.lane.b32.xlu0 %v1726, 32
      %v2065 = vpop.permute.xlu0 %2064
      %2066 = vrot.lane.b32.xlu0 %v1738, 32
      %v2067 = vpop.permute.xlu0 %2066
      %2068 = vrot.lane.b32.xlu0 %v1750, 32
      %v2069 = vpop.permute.xlu0 %2068
      %2070 = vrot.lane.b32.xlu0 %v1762, 32
      %v2071 = vpop.permute.xlu0 %2070
      %2072 = vrot.lane.b32.xlu0 %v1774, 32
      %v2073 = vpop.permute.xlu0 %2072
      %2074 = vrot.lane.b32.xlu0 %v1786, 32
      %v2075 = vpop.permute.xlu0 %2074
      %2076 = vrot.lane.b32.xlu0 %v1798, 32
      %v2077 = vpop.permute.xlu0 %2076
      %2078 = vrot.lane.b32.xlu0 %v1810, 32
      %v2079 = vpop.permute.xlu0 %2078
      %2080 = vrot.lane.b32.xlu0 %v1822, 32
      %v2081 = vpop.permute.xlu0 %2080
      %2082 = vrot.lane.b32.xlu0 %v1834, 32
      %v2083 = vpop.permute.xlu0 %2082
      %2084 = vrot.lane.b32.xlu0 %v1846, 32
      %v2085 = vpop.permute.xlu0 %2084
      %2086 = vrot.lane.b32.xlu0 %v1858, 32
      %v2087 = vpop.permute.xlu0 %2086
      %2088 = vrot.lane.b32.xlu0 %v1870, 32
      %v2089 = vpop.permute.xlu0 %2088
      %2090 = vrot.lane.b32.xlu0 %v2059, 32
      %v2091 = vpop.permute.xlu0 %2090
      %v2093 = vrot.slane %v1661, 1
      %v2094 = vrot.slane %v1678, 1
      %v2095 = vsel %vm633, %v2093, %v2094
      %2096 = vrot.lane.b32.xlu0 %v1940, 40
      %v2097 = vpop.permute.xlu0 %2096
      %2098 = vrot.lane.b32.xlu0 %v1943, 40
      %v2099 = vpop.permute.xlu0 %2098
      %2100 = vrot.lane.b32.xlu0 %v1946, 40
      %v2101 = vpop.permute.xlu0 %2100
      %2102 = vrot.lane.b32.xlu0 %v1949, 40
      %v2103 = vpop.permute.xlu0 %2102
      %2104 = vrot.lane.b32.xlu0 %v1952, 40
      %v2105 = vpop.permute.xlu0 %2104
      %2106 = vrot.lane.b32.xlu0 %v1955, 40
      %v2107 = vpop.permute.xlu0 %2106
      %2108 = vrot.lane.b32.xlu0 %v1958, 40
      %v2109 = vpop.permute.xlu0 %2108
      %2110 = vrot.lane.b32.xlu0 %v1961, 40
      %v2111 = vpop.permute.xlu0 %2110
      %2112 = vrot.lane.b32.xlu0 %v1964, 40
      %v2113 = vpop.permute.xlu0 %2112
      %2114 = vrot.lane.b32.xlu0 %v1967, 40
      %v2115 = vpop.permute.xlu0 %2114
      %2116 = vrot.lane.b32.xlu0 %v1970, 40
      %v2117 = vpop.permute.xlu0 %2116
      %2118 = vrot.lane.b32.xlu0 %v1973, 40
      %v2119 = vpop.permute.xlu0 %2118
      %2120 = vrot.lane.b32.xlu0 %v1976, 40
      %v2121 = vpop.permute.xlu0 %2120
      %2122 = vrot.lane.b32.xlu0 %v1979, 40
      %v2123 = vpop.permute.xlu0 %2122
      %2124 = vrot.lane.b32.xlu0 %v1982, 40
      %v2125 = vpop.permute.xlu0 %2124
      %2126 = vrot.lane.b32.xlu0 %v2095, 40
      %v2127 = vpop.permute.xlu0 %2126
      %2128 = vrot.lane.b32.xlu0 %v1647, 48
      %v2129 = vpop.permute.xlu0 %2128
      %2130 = vrot.lane.b32.xlu0 %v1648, 48
      %v2131 = vpop.permute.xlu0 %2130
      %2132 = vrot.lane.b32.xlu0 %v1649, 48
      %v2133 = vpop.permute.xlu0 %2132
      %2134 = vrot.lane.b32.xlu0 %v1650, 48
      %v2135 = vpop.permute.xlu0 %2134
      %2136 = vrot.lane.b32.xlu0 %v1651, 48
      %v2137 = vpop.permute.xlu0 %2136
      %2138 = vrot.lane.b32.xlu0 %v1652, 48
      %v2139 = vpop.permute.xlu0 %2138
      %2140 = vrot.lane.b32.xlu0 %v1653, 48
      %v2141 = vpop.permute.xlu0 %2140
      %2142 = vrot.lane.b32.xlu0 %v1654, 48
      %v2143 = vpop.permute.xlu0 %2142
      %2144 = vrot.lane.b32.xlu0 %v1655, 48
      %v2145 = vpop.permute.xlu0 %2144
      %2146 = vrot.lane.b32.xlu0 %v1656, 48
      %v2147 = vpop.permute.xlu0 %2146
      %2148 = vrot.lane.b32.xlu0 %v1657, 48
      %v2149 = vpop.permute.xlu0 %2148
      %2150 = vrot.lane.b32.xlu0 %v1658, 48
      %v2151 = vpop.permute.xlu0 %2150
      %2152 = vrot.lane.b32.xlu0 %v1659, 48
      %v2153 = vpop.permute.xlu0 %2152
      %2154 = vrot.lane.b32.xlu0 %v1660, 48
      %v2155 = vpop.permute.xlu0 %2154
      %2156 = vrot.lane.b32.xlu0 %v1661, 48
      %v2157 = vpop.permute.xlu0 %2156
      %2158 = vrot.lane.b32.xlu0 %v1645, 48
      %v2159 = vpop.permute.xlu0 %2158
      %2160 = vrot.lane.b32.xlu0 %v1714, 56
      %v2161 = vpop.permute.xlu0 %2160
      %2162 = vrot.lane.b32.xlu0 %v1726, 56
      %v2163 = vpop.permute.xlu0 %2162
      %2164 = vrot.lane.b32.xlu0 %v1738, 56
      %v2165 = vpop.permute.xlu0 %2164
      %2166 = vrot.lane.b32.xlu0 %v1750, 56
      %v2167 = vpop.permute.xlu0 %2166
      %2168 = vrot.lane.b32.xlu0 %v1762, 56
      %v2169 = vpop.permute.xlu0 %2168
      %2170 = vrot.lane.b32.xlu0 %v1774, 56
      %v2171 = vpop.permute.xlu0 %2170
      %2172 = vrot.lane.b32.xlu0 %v1786, 56
      %v2173 = vpop.permute.xlu0 %2172
      %2174 = vrot.lane.b32.xlu0 %v1798, 56
      %v2175 = vpop.permute.xlu0 %2174
      %2176 = vrot.lane.b32.xlu0 %v1810, 56
      %v2177 = vpop.permute.xlu0 %2176
      %2178 = vrot.lane.b32.xlu0 %v1822, 56
      %v2179 = vpop.permute.xlu0 %2178
      %2180 = vrot.lane.b32.xlu0 %v1834, 56
      %v2181 = vpop.permute.xlu0 %2180
      %2182 = vrot.lane.b32.xlu0 %v1846, 56
      %v2183 = vpop.permute.xlu0 %2182
      %2184 = vrot.lane.b32.xlu0 %v1858, 56
      %v2185 = vpop.permute.xlu0 %2184
      %2186 = vrot.lane.b32.xlu0 %v1870, 56
      %v2187 = vpop.permute.xlu0 %2186
      %2188 = vrot.lane.b32.xlu0 %v2059, 56
      %v2189 = vpop.permute.xlu0 %2188
      %2190 = vrot.lane.b32.xlu0 %v1690, 56
      %v2191 = vpop.permute.xlu0 %2190
      %2192 = vrot.lane.b32.xlu0 %v1943, 64
      %v2193 = vpop.permute.xlu0 %2192
      %2194 = vrot.lane.b32.xlu0 %v1946, 64
      %v2195 = vpop.permute.xlu0 %2194
      %2196 = vrot.lane.b32.xlu0 %v1949, 64
      %v2197 = vpop.permute.xlu0 %2196
      %2198 = vrot.lane.b32.xlu0 %v1952, 64
      %v2199 = vpop.permute.xlu0 %2198
      %2200 = vrot.lane.b32.xlu0 %v1955, 64
      %v2201 = vpop.permute.xlu0 %2200
      %2202 = vrot.lane.b32.xlu0 %v1958, 64
      %v2203 = vpop.permute.xlu0 %2202
      %2204 = vrot.lane.b32.xlu0 %v1961, 64
      %v2205 = vpop.permute.xlu0 %2204
      %2206 = vrot.lane.b32.xlu0 %v1964, 64
      %v2207 = vpop.permute.xlu0 %2206
      %2208 = vrot.lane.b32.xlu0 %v1967, 64
      %v2209 = vpop.permute.xlu0 %2208
      %2210 = vrot.lane.b32.xlu0 %v1970, 64
      %v2211 = vpop.permute.xlu0 %2210
      %2212 = vrot.lane.b32.xlu0 %v1973, 64
      %v2213 = vpop.permute.xlu0 %2212
      %2214 = vrot.lane.b32.xlu0 %v1976, 64
      %v2215 = vpop.permute.xlu0 %2214
      %2216 = vrot.lane.b32.xlu0 %v1979, 64
      %v2217 = vpop.permute.xlu0 %2216
      %2218 = vrot.lane.b32.xlu0 %v1982, 64
      %v2219 = vpop.permute.xlu0 %2218
      %2220 = vrot.lane.b32.xlu0 %v2095, 64
      %v2221 = vpop.permute.xlu0 %2220
      %2222 = vrot.lane.b32.xlu0 %v1937, 64
      %v2223 = vpop.permute.xlu0 %2222
      %v2225 = vsel %vm985, %v1645, %v1872
      %v2227 = vsel %vm985, %v1646, %v1874
      %v2229 = vsel %vm985, %v1647, %v1876
      %v2231 = vsel %vm985, %v1648, %v1878
      %v2233 = vsel %vm985, %v1649, %v1880
      %v2235 = vsel %vm985, %v1650, %v1882
      %v2237 = vsel %vm985, %v1651, %v1884
      %v2239 = vsel %vm985, %v1652, %v1886
      %v2241 = vsel %vm985, %v1653, %v1888
      %v2243 = vsel %vm985, %v1654, %v1890
      %v2245 = vsel %vm985, %v1655, %v1892
      %v2247 = vsel %vm985, %v1656, %v1894
      %v2249 = vsel %vm985, %v1657, %v1896
      %v2251 = vsel %vm985, %v1658, %v1898
      %v2253 = vsel %vm985, %v1659, %v1900
      %v2255 = vsel %vm985, %v1660, %v1902
      %v2257 = vsel %vm1051, %v2225, %v1984
      %v2259 = vsel %vm1051, %v2227, %v1986
      %v2261 = vsel %vm1051, %v2229, %v1988
      %v2263 = vsel %vm1051, %v2231, %v1990
      %v2265 = vsel %vm1051, %v2233, %v1992
      %v2267 = vsel %vm1051, %v2235, %v1994
      %v2269 = vsel %vm1051, %v2237, %v1996
      %v2271 = vsel %vm1051, %v2239, %v1998
      %v2273 = vsel %vm1051, %v2241, %v2000
      %v2275 = vsel %vm1051, %v2243, %v2002
      %v2277 = vsel %vm1051, %v2245, %v2004
      %v2279 = vsel %vm1051, %v2247, %v2006
      %v2281 = vsel %vm1051, %v2249, %v2008
      %v2283 = vsel %vm1051, %v2251, %v2010
      %v2285 = vsel %vm1051, %v2253, %v2012
      %v2287 = vsel %vm1051, %v2255, %v2014
      %v2289 = vsel %vm1117, %v2257, %v2017
      %v2291 = vsel %vm1117, %v2259, %v2019
      %v2293 = vsel %vm1117, %v2261, %v2021
      %v2295 = vsel %vm1117, %v2263, %v2023
      %v2297 = vsel %vm1117, %v2265, %v2025
      %v2299 = vsel %vm1117, %v2267, %v2027
      %v2301 = vsel %vm1117, %v2269, %v2029
      %v2303 = vsel %vm1117, %v2271, %v2031
      %v2305 = vsel %vm1117, %v2273, %v2033
      %v2307 = vsel %vm1117, %v2275, %v2035
      %v2309 = vsel %vm1117, %v2277, %v2037
      %v2311 = vsel %vm1117, %v2279, %v2039
      %v2313 = vsel %vm1117, %v2281, %v2041
      %v2315 = vsel %vm1117, %v2283, %v2043
      %v2317 = vsel %vm1117, %v2285, %v2045
      %v2319 = vsel %vm1117, %v2287, %v2047
      %v2321 = vsel %vm1183, %v2289, %v2061
      %v2323 = vsel %vm1183, %v2291, %v2063
      %v2325 = vsel %vm1183, %v2293, %v2065
      %v2327 = vsel %vm1183, %v2295, %v2067
      %v2329 = vsel %vm1183, %v2297, %v2069
      %v2331 = vsel %vm1183, %v2299, %v2071
      %v2333 = vsel %vm1183, %v2301, %v2073
      %v2335 = vsel %vm1183, %v2303, %v2075
      %v2337 = vsel %vm1183, %v2305, %v2077
      %v2339 = vsel %vm1183, %v2307, %v2079
      %v2341 = vsel %vm1183, %v2309, %v2081
      %v2343 = vsel %vm1183, %v2311, %v2083
      %v2345 = vsel %vm1183, %v2313, %v2085
      %v2347 = vsel %vm1183, %v2315, %v2087
      %v2349 = vsel %vm1183, %v2317, %v2089
      %v2351 = vsel %vm1183, %v2319, %v2091
      %vm2352 = vcmask 326656
      %v2354 = vsel %vm2352, %v2321, %v2097
      %v2356 = vsel %vm2352, %v2323, %v2099
      %v2358 = vsel %vm2352, %v2325, %v2101
      %v2360 = vsel %vm2352, %v2327, %v2103
      %v2362 = vsel %vm2352, %v2329, %v2105
      %v2364 = vsel %vm2352, %v2331, %v2107
      %v2366 = vsel %vm2352, %v2333, %v2109
      %v2368 = vsel %vm2352, %v2335, %v2111
      %v2370 = vsel %vm2352, %v2337, %v2113
      %v2372 = vsel %vm2352, %v2339, %v2115
      %v2374 = vsel %vm2352, %v2341, %v2117
      %v2376 = vsel %vm2352, %v2343, %v2119
      %v2378 = vsel %vm2352, %v2345, %v2121
      %v2380 = vsel %vm2352, %v2347, %v2123
      %v2382 = vsel %vm2352, %v2349, %v2125
      %v2384 = vsel %vm2352, %v2351, %v2127
      %vm2385 = vcmask 392192
      %v2387 = vsel %vm2385, %v2354, %v2129
      %v2389 = vsel %vm2385, %v2356, %v2131
      %v2391 = vsel %vm2385, %v2358, %v2133
      %v2393 = vsel %vm2385, %v2360, %v2135
      %v2395 = vsel %vm2385, %v2362, %v2137
      %v2397 = vsel %vm2385, %v2364, %v2139
      %v2399 = vsel %vm2385, %v2366, %v2141
      %v2401 = vsel %vm2385, %v2368, %v2143
      %v2403 = vsel %vm2385, %v2370, %v2145
      %v2405 = vsel %vm2385, %v2372, %v2147
      %v2407 = vsel %vm2385, %v2374, %v2149
      %v2409 = vsel %vm2385, %v2376, %v2151
      %v2411 = vsel %vm2385, %v2378, %v2153
      %v2413 = vsel %vm2385, %v2380, %v2155
      %v2415 = vsel %vm2385, %v2382, %v2157
      %v2417 = vsel %vm2385, %v2384, %v2159
      %vm2418 = vcmask 457728
      %v2420 = vsel %vm2418, %v2387, %v2161
      %v2422 = vsel %vm2418, %v2389, %v2163
      %v2424 = vsel %vm2418, %v2391, %v2165
      %v2426 = vsel %vm2418, %v2393, %v2167
      %v2428 = vsel %vm2418, %v2395, %v2169
      %v2430 = vsel %vm2418, %v2397, %v2171
      %v2432 = vsel %vm2418, %v2399, %v2173
      %v2434 = vsel %vm2418, %v2401, %v2175
      %v2436 = vsel %vm2418, %v2403, %v2177
      %v2438 = vsel %vm2418, %v2405, %v2179
      %v2440 = vsel %vm2418, %v2407, %v2181
      %v2442 = vsel %vm2418, %v2409, %v2183
      %v2444 = vsel %vm2418, %v2411, %v2185
      %v2446 = vsel %vm2418, %v2413, %v2187
      %v2448 = vsel %vm2418, %v2415, %v2189
      %v2450 = vsel %vm2418, %v2417, %v2191
      %vm2451 = vcmask 523264
      %v2453 = vsel %vm2451, %v2420, %v2193
      %v2455 = vsel %vm2451, %v2422, %v2195
      %v2457 = vsel %vm2451, %v2424, %v2197
      %v2459 = vsel %vm2451, %v2426, %v2199
      %v2461 = vsel %vm2451, %v2428, %v2201
      %v2463 = vsel %vm2451, %v2430, %v2203
      %v2465 = vsel %vm2451, %v2432, %v2205
      %v2467 = vsel %vm2451, %v2434, %v2207
      %v2469 = vsel %vm2451, %v2436, %v2209
      %v2471 = vsel %vm2451, %v2438, %v2211
      %v2473 = vsel %vm2451, %v2440, %v2213
      %v2475 = vsel %vm2451, %v2442, %v2215
      %v2477 = vsel %vm2451, %v2444, %v2217
      %v2479 = vsel %vm2451, %v2446, %v2219
      %v2481 = vsel %vm2451, %v2448, %v2221
      %v2483 = vsel %vm2451, %v2450, %v2223
      %v2484 = vld [vmem:[%s2] sm:$0xf]
      %v2485 = vld [vmem:[%s2 + $0x4] sm:$0xf]
      %v2486 = vld [vmem:[%s2 + $0x8] sm:$0xf]
      %v2487 = vld [vmem:[%s2 + $0xc] sm:$0xf]
      %v2488 = vld [vmem:[%s2 + $0x10] sm:$0xf]
      %v2489 = vld [vmem:[%s2 + $0x14] sm:$0xf]
      %v2490 = vld [vmem:[%s2 + $0x18] sm:$0xf]
      %v2491 = vld [vmem:[%s2 + $0x1c] sm:$0xf]
      %v2492 = vld [vmem:[%s2 + $0x20] sm:$0xf]
      %v2493 = vld [vmem:[%s4] sm:$0x1]
      %v2495 = vlaneseq
      %v2496 = vshrl.u32 %v2495, 7
      %v2497 = vsub.s32 0, %v2496
      %v2498 = vrot.slane %v2493, %v2497
      %v2509 = vunpack.c.l.b16 %v2484
      %v2510 = vunpack.c.l.b16 %v2485
      %v2511 = vunpack.c.l.b16 %v2486
      %v2512 = vunpack.c.l.b16 %v2487
      %v2513 = vunpack.c.l.b16 %v2488
      %v2514 = vunpack.c.l.b16 %v2489
      %v2515 = vunpack.c.l.b16 %v2490
      %v2516 = vunpack.c.l.b16 %v2491
      %v2517 = vunpack.c.l.b16 %v2492
      %v2518 = vpack.c.b16 %v2510, %v2509
      %v2519 = vpack.c.b16 %v2512, %v2511
      %v2520 = vpack.c.b16 %v2514, %v2513
      %v2521 = vpack.c.b16 %v2516, %v2515
      %v2522 = vpack.c.b16 %v2517, %v2517
      %vm2527 = vcmask 588800
      %v2528 = vsel %vm2527, %v2453, 0
      %v2530 = vsel %vm2527, %v2455, 0
      %v2532 = vsel %vm2527, %v2457, 0
      %v2534 = vsel %vm2527, %v2459, 0
      %v2536 = vsel %vm2527, %v2461, 0
      %v2538 = vsel %vm2527, %v2463, 0
      %v2540 = vsel %vm2527, %v2465, 0
      %v2542 = vsel %vm2527, %v2467, 0
      %v2544 = vsel %vm2527, %v2469, 0
      %v2546 = vsel %vm2527, %v2471, 0
      %v2548 = vsel %vm2527, %v2473, 0
      %v2550 = vsel %vm2527, %v2475, 0
      %v2552 = vsel %vm2527, %v2477, 0
      %v2554 = vsel %vm2527, %v2479, 0
      %v2556 = vsel %vm2527, %v2481, 0
      %v2558 = vsel %vm2527, %v2483, 0
      %vm2560 = vcmask 1043456
      %v2562 = vsel %vm2560, %v2522, 0
      %2564 = vmatprep.subr.bf16.mxu0 0
      %2565 = vmatpush1.bf16.msra.mxu0 0
      %2566 = vmatprep.subr.bf16.mxu0 0
      %2567 = vmatpush1.bf16.msra.mxu0 0
      %2568 = vmatprep.subr.bf16.mxu0 0
      %2569 = vmatpush1.bf16.msra.mxu0 0
      %2570 = vmatprep.subr.bf16.mxu0 0
      %2571 = vmatpush1.bf16.msra.mxu0 %v2562
      %2572 = vmatprep.subr.bf16.mxu0 0
      %2573 = vmatpush1.bf16.msra.mxu0 %v2521
      %2574 = vmatprep.subr.bf16.mxu0 0
      %2575 = vmatpush1.bf16.msra.mxu0 %v2520
      %2576 = vmatprep.subr.bf16.mxu0 0
      %2577 = vmatpush1.bf16.msra.mxu0 %v2519
      %2578 = vmatprep.subr.bf16.mxu0 0
      %2579 = vmatpush1.bf16.msra.mxu0 %v2518
      %2580 = vmatprep.subr.bf16.mxu0 0
      %2581 = vmatpush2.bf16.msra.mxu0 0
      %2582 = vmatprep.subr.bf16.mxu0 0
      %2583 = vmatpush2.bf16.msra.mxu0 0
      %2584 = vmatprep.subr.bf16.mxu0 0
      %2585 = vmatpush2.bf16.msra.mxu0 0
      %2586 = vmatprep.subr.bf16.mxu0 0
      %2587 = vmatpush2.bf16.msra.mxu0 0
      %2588 = vmatprep.subr.bf16.mxu0 0
      %2589 = vmatpush2.bf16.msra.mxu0 0
      %2590 = vmatprep.subr.bf16.mxu0 0
      %2591 = vmatpush2.bf16.msra.mxu0 0
      %2592 = vmatprep.subr.bf16.mxu0 0
      %2593 = vmatpush2.bf16.msra.mxu0 0
      %2594 = vmatprep.subr.bf16.mxu0 0
      %2595 = vmatpush2.bf16.msra.mxu0 0
      %2596 = vmatprep.mubr.bf16.mxu0 0
      %2597 = vmatmul.mubr.bf16.gmra.mxu0 %v2528
      %v2598 = vpop.f32.mrf.mxu0
      %v2599 = vadd.f32 %v2498, %v2598
      %v2600 = vpop.f32.mrf.mxu0
      %v2601 = vpop.f32.mrf.mxu0
      %v2602 = vadd.f32 %v2498, %v2601
      %v2603 = vpop.f32.mrf.mxu0
      %2604 = vmatprep.mubr.bf16.mxu0 0
      %2605 = vmatmul.mubr.bf16.gmra.mxu0 %v2530
      %v2606 = vpop.f32.mrf.mxu0
      %v2607 = vadd.f32 %v2498, %v2606
      %v2608 = vpop.f32.mrf.mxu0
      %v2609 = vpop.f32.mrf.mxu0
      %v2610 = vadd.f32 %v2498, %v2609
      %v2611 = vpop.f32.mrf.mxu0
      %2612 = vmatprep.mubr.bf16.mxu0 0
      %2613 = vmatmul.mubr.bf16.gmra.mxu0 %v2532
      %v2614 = vpop.f32.mrf.mxu0
      %v2615 = vadd.f32 %v2498, %v2614
      %v2616 = vpop.f32.mrf.mxu0
      %v2617 = vpop.f32.mrf.mxu0
      %v2618 = vadd.f32 %v2498, %v2617
      %v2619 = vpop.f32.mrf.mxu0
      %2620 = vmatprep.mubr.bf16.mxu0 0
      %2621 = vmatmul.mubr.bf16.gmra.mxu0 %v2534
      %v2622 = vpop.f32.mrf.mxu0
      %v2623 = vadd.f32 %v2498, %v2622
      %v2624 = vpop.f32.mrf.mxu0
      %v2625 = vpop.f32.mrf.mxu0
      %v2626 = vadd.f32 %v2498, %v2625
      %v2627 = vpop.f32.mrf.mxu0
      %2628 = vmatprep.mubr.bf16.mxu0 0
      %2629 = vmatmul.mubr.bf16.gmra.mxu0 %v2536
      %v2630 = vpop.f32.mrf.mxu0
      %v2631 = vadd.f32 %v2498, %v2630
      %v2632 = vpop.f32.mrf.mxu0
      %v2633 = vpop.f32.mrf.mxu0
      %v2634 = vadd.f32 %v2498, %v2633
      %v2635 = vpop.f32.mrf.mxu0
      %2636 = vmatprep.mubr.bf16.mxu0 0
      %2637 = vmatmul.mubr.bf16.gmra.mxu0 %v2538
      %v2638 = vpop.f32.mrf.mxu0
      %v2639 = vadd.f32 %v2498, %v2638
      %v2640 = vpop.f32.mrf.mxu0
      %v2641 = vpop.f32.mrf.mxu0
      %v2642 = vadd.f32 %v2498, %v2641
      %v2643 = vpop.f32.mrf.mxu0
      %2644 = vmatprep.mubr.bf16.mxu0 0
      %2645 = vmatmul.mubr.bf16.gmra.mxu0 %v2540
      %v2646 = vpop.f32.mrf.mxu0
      %v2647 = vadd.f32 %v2498, %v2646
      %v2648 = vpop.f32.mrf.mxu0
      %v2649 = vpop.f32.mrf.mxu0
      %v2650 = vadd.f32 %v2498, %v2649
      %v2651 = vpop.f32.mrf.mxu0
      %2652 = vmatprep.mubr.bf16.mxu0 0
      %2653 = vmatmul.mubr.bf16.gmra.mxu0 %v2542
      %v2654 = vpop.f32.mrf.mxu0
      %v2655 = vadd.f32 %v2498, %v2654
      %v2656 = vpop.f32.mrf.mxu0
      %v2657 = vpop.f32.mrf.mxu0
      %v2658 = vadd.f32 %v2498, %v2657
      %v2659 = vpop.f32.mrf.mxu0
      %2660 = vmatprep.mubr.bf16.mxu0 0
      %2661 = vmatmul.mubr.bf16.gmra.mxu0 %v2544
      %v2662 = vpop.f32.mrf.mxu0
      %v2663 = vadd.f32 %v2498, %v2662
      %v2664 = vpop.f32.mrf.mxu0
      %v2665 = vpop.f32.mrf.mxu0
      %v2666 = vadd.f32 %v2498, %v2665
      %v2667 = vpop.f32.mrf.mxu0
      %2668 = vmatprep.mubr.bf16.mxu0 0
      %2669 = vmatmul.mubr.bf16.gmra.mxu0 %v2546
      %v2670 = vpop.f32.mrf.mxu0
      %v2671 = vadd.f32 %v2498, %v2670
      %v2672 = vpop.f32.mrf.mxu0
      %v2673 = vpop.f32.mrf.mxu0
      %v2674 = vadd.f32 %v2498, %v2673
      %v2675 = vpop.f32.mrf.mxu0
      %2676 = vmatprep.mubr.bf16.mxu0 0
      %2677 = vmatmul.mubr.bf16.gmra.mxu0 %v2548
      %v2678 = vpop.f32.mrf.mxu0
      %v2679 = vadd.f32 %v2498, %v2678
      %v2680 = vpop.f32.mrf.mxu0
      %v2681 = vpop.f32.mrf.mxu0
      %v2682 = vadd.f32 %v2498, %v2681
      %v2683 = vpop.f32.mrf.mxu0
      %2684 = vmatprep.mubr.bf16.mxu0 0
      %2685 = vmatmul.mubr.bf16.gmra.mxu0 %v2550
      %v2686 = vpop.f32.mrf.mxu0
      %v2687 = vadd.f32 %v2498, %v2686
      %v2688 = vpop.f32.mrf.mxu0
      %v2689 = vpop.f32.mrf.mxu0
      %v2690 = vadd.f32 %v2498, %v2689
      %v2691 = vpop.f32.mrf.mxu0
      %2692 = vmatprep.mubr.bf16.mxu0 0
      %2693 = vmatmul.mubr.bf16.gmra.mxu0 %v2552
      %v2694 = vpop.f32.mrf.mxu0
      %v2695 = vadd.f32 %v2498, %v2694
      %v2696 = vpop.f32.mrf.mxu0
      %v2697 = vpop.f32.mrf.mxu0
      %v2698 = vadd.f32 %v2498, %v2697
      %v2699 = vpop.f32.mrf.mxu0
      %2700 = vmatprep.mubr.bf16.mxu0 0
      %2701 = vmatmul.mubr.bf16.gmra.mxu0 %v2554
      %v2702 = vpop.f32.mrf.mxu0
      %v2703 = vadd.f32 %v2498, %v2702
      %v2704 = vpop.f32.mrf.mxu0
      %v2705 = vpop.f32.mrf.mxu0
      %v2706 = vadd.f32 %v2498, %v2705
      %v2707 = vpop.f32.mrf.mxu0
      %2708 = vmatprep.mubr.bf16.mxu0 0
      %2709 = vmatmul.mubr.bf16.gmra.mxu0 %v2556
      %v2710 = vpop.f32.mrf.mxu0
      %v2711 = vadd.f32 %v2498, %v2710
      %v2712 = vpop.f32.mrf.mxu0
      %v2713 = vpop.f32.mrf.mxu0
      %v2714 = vadd.f32 %v2498, %v2713
      %v2715 = vpop.f32.mrf.mxu0
      %2716 = vmatprep.mubr.bf16.mxu0 0
      %2717 = vmatmul.mubr.bf16.gmra.mxu0 %v2558
      %v2718 = vpop.f32.mrf.mxu0
      %v2719 = vadd.f32 %v2498, %v2718
      %v2720 = vpop.f32.mrf.mxu0
      %v2721 = vpop.f32.mrf.mxu0
      %v2722 = vadd.f32 %v2498, %v2721
      %v2723 = vpop.f32.mrf.mxu0
      %2724 = vdwg.mxu0
      %v2725 = vmax.f32 %v2599, 0.0
      %v2726 = vmax.f32 %v2602, 0.0
      %v2727 = vmax.f32 %v2607, 0.0
      %v2728 = vmax.f32 %v2610, 0.0
      %v2729 = vmax.f32 %v2615, 0.0
      %v2730 = vmax.f32 %v2618, 0.0
      %v2731 = vmax.f32 %v2623, 0.0
      %v2732 = vmax.f32 %v2626, 0.0
      %v2733 = vmax.f32 %v2631, 0.0
      %v2734 = vmax.f32 %v2634, 0.0
      %v2735 = vmax.f32 %v2639, 0.0
      %v2736 = vmax.f32 %v2642, 0.0
      %v2737 = vmax.f32 %v2647, 0.0
      %v2738 = vmax.f32 %v2650, 0.0
      %v2739 = vmax.f32 %v2655, 0.0
      %v2740 = vmax.f32 %v2658, 0.0
      %v2741 = vmax.f32 %v2663, 0.0
      %v2742 = vmax.f32 %v2666, 0.0
      %v2743 = vmax.f32 %v2671, 0.0
      %v2744 = vmax.f32 %v2674, 0.0
      %v2745 = vmax.f32 %v2679, 0.0
      %v2746 = vmax.f32 %v2682, 0.0
      %v2747 = vmax.f32 %v2687, 0.0
      %v2748 = vmax.f32 %v2690, 0.0
      %v2749 = vmax.f32 %v2695, 0.0
      %v2750 = vmax.f32 %v2698, 0.0
      %v2751 = vmax.f32 %v2703, 0.0
      %v2752 = vmax.f32 %v2706, 0.0
      %v2753 = vmax.f32 %v2711, 0.0
      %v2754 = vmax.f32 %v2714, 0.0
      %v2755 = vmax.f32 %v2719, 0.0
      %v2756 = vmax.f32 %v2722, 0.0
      %2757 = vst.msk [vmem:[%s224] sm:$0xff] %vm985, %v2725
      %2758 = vst.msk [vmem:[%s224 + $0x8] sm:$0xff] %vm985, %v2726
      %2759 = vst.msk [vmem:[%s224 + $0x10] sm:$0xff] %vm985, %v2727
      %2760 = vst.msk [vmem:[%s224 + $0x18] sm:$0xff] %vm985, %v2728
      %2761 = vst.msk [vmem:[%s224 + $0x20] sm:$0xff] %vm985, %v2729
      %2762 = vst.msk [vmem:[%s224 + $0x28] sm:$0xff] %vm985, %v2730
      %2763 = vst.msk [vmem:[%s224 + $0x30] sm:$0xff] %vm985, %v2731
      %2764 = vst.msk [vmem:[%s224 + $0x38] sm:$0xff] %vm985, %v2732
      %2765 = vst.msk [vmem:[%s224 + $0x40] sm:$0xff] %vm985, %v2733
      %2766 = vst.msk [vmem:[%s224 + $0x48] sm:$0xff] %vm985, %v2734
      %2767 = vst.msk [vmem:[%s224 + $0x50] sm:$0xff] %vm985, %v2735
      %2768 = vst.msk [vmem:[%s224 + $0x58] sm:$0xff] %vm985, %v2736
      %2769 = vst.msk [vmem:[%s224 + $0x60] sm:$0xff] %vm985, %v2737
      %2770 = vst.msk [vmem:[%s224 + $0x68] sm:$0xff] %vm985, %v2738
      %2771 = vst.msk [vmem:[%s224 + $0x70] sm:$0xff] %vm985, %v2739
      %2772 = vst.msk [vmem:[%s224 + $0x78] sm:$0xff] %vm985, %v2740
      %2773 = vst.msk [vmem:[%s224 + $0x80] sm:$0xff] %vm985, %v2741
      %2774 = vst.msk [vmem:[%s224 + $0x88] sm:$0xff] %vm985, %v2742
      %2775 = vst.msk [vmem:[%s224 + $0x90] sm:$0xff] %vm985, %v2743
      %2776 = vst.msk [vmem:[%s224 + $0x98] sm:$0xff] %vm985, %v2744
      %2777 = vst.msk [vmem:[%s224 + $0xa0] sm:$0xff] %vm985, %v2745
      %2778 = vst.msk [vmem:[%s224 + $0xa8] sm:$0xff] %vm985, %v2746
      %2779 = vst.msk [vmem:[%s224 + $0xb0] sm:$0xff] %vm985, %v2747
      %2780 = vst.msk [vmem:[%s224 + $0xb8] sm:$0xff] %vm985, %v2748
      %2781 = vst.msk [vmem:[%s224 + $0xc0] sm:$0xff] %vm985, %v2749
      %2782 = vst.msk [vmem:[%s224 + $0xc8] sm:$0xff] %vm985, %v2750
      %2783 = vst.msk [vmem:[%s224 + $0xd0] sm:$0xff] %vm985, %v2751
      %2784 = vst.msk [vmem:[%s224 + $0xd8] sm:$0xff] %vm985, %v2752
      %2785 = vst.msk [vmem:[%s224 + $0xe0] sm:$0xff] %vm985, %v2753
      %2786 = vst.msk [vmem:[%s224 + $0xe8] sm:$0xff] %vm985, %v2754
      %2787 = vst.msk [vmem:[%s224 + $0xf0] sm:$0xff] %vm985, %v2755
      %2788 = vst.msk [vmem:[%s224 + $0xf8] sm:$0xff] %vm985, %v2756
      %p2789 = scmp.lt.s32.totalorder %s16, 1
      %s2790 = scalar_select %p2789, %s16, 1
      %s2791 = smul.addr %s2790, 32
      %s2792 = smul.addr %s2791, 8
      %s2793 = scalar_lea.vmem %s5, %s2792
      // Predicated region
      $region41: #{multi_conv_forward.1} parent=39 // pred_check
        %p2794 = pneg %p144
      $region42: #{multi_conv_forward.1} parent=39 // pred_check_branch
        %2796 = sbr.rel (%p2794) target = $region44
      $region43: #{multi_conv_forward.1} parent=39 // pred_region
        _
      $region44: #{multi_conv_forward.1} parent=39 // pred_fallthru
        _
    $region40: #{multi_conv_forward.1} parent=5 // pred_fallthru
      _
    %p2797 = scmp.le.s32.totalorder 2, %s11
    // Predicated region
    $region45: #{multi_conv_forward.1} parent=5 // pred_check
      %p2798 = pneg %p2797
    $region46: #{multi_conv_forward.1} parent=5 // pred_check_branch
      %2800 = sbr.rel (%p2798) target = $region48
    $region47: #{multi_conv_forward.1} parent=5 // pred_region
      %s2801 = ssub.s32 %s11, 2
      // Predicated region
      $region49: #{multi_conv_forward.1} parent=47 // pred_check
        %p2802 = pneg %p150
      $region50: #{multi_conv_forward.1} parent=47 // pred_check_branch
        %2804 = sbr.rel (%p2802) target = $region52
      $region51: #{multi_conv_forward.1} parent=47 // pred_region
        %p2805 = scmp.lt.s32.totalorder %s17, 1
        %s2806 = scalar_select %p2805, %s17, 1
        %s2807 = smul.addr %s2806, 32
        %s2808 = smul.addr %s2807, 8
        %s2809 = scalar_lea.vmem %s5, %s2808
      $region52: #{multi_conv_forward.1} parent=47 // pred_fallthru
        _
    $region48: #{multi_conv_forward.1} parent=5 // pred_fallthru
      _
  $region6: #{multi_conv_forward.1} parent=0 // loop_footer
    %s15 = sadd.s32 1, %s11
  $region7: #{multi_conv_forward.1} parent=0 // loop_footer_branch
    %10 = sbr.rel target = $region3
  $region8: #{multi_conv_forward.1} parent=0 // loop_exit
    _

</llo_original>
